<compile_context>
chip_gen: v5e
topology: v5e:2x2
jax: 0.10.0
libtpu: 0.0.40
codegen_flags: <defaults>
</compile_context>

<pallas_src>
import functools

import jax
import jax.numpy as jnp
from jax import lax
from jax.experimental import pallas as pl
from jax.experimental.pallas import tpu as pltpu


def causal_attn_kernel(x_ref, w_attn_ref, b_attn_ref, w_proj_ref, b_proj_ref,
                       o_ref, *, n_head, lane_dense_out):
    x = x_ref[0]                                   # (T, C) bf16 (cast in wrapper)
    T, C = x.shape
    hd = C // n_head
    scale = 1.0 / float(hd) ** 0.5

    # ---- QKV projection: (T, C) @ (C, 3C) + (1, 3C). bf16 operands, f32 accum.
    qkv = jnp.dot(x, w_attn_ref[...], preferred_element_type=jnp.float32) \
          + b_attn_ref[...]

    # Fold the attention scale into q once; cast matmul operands to bf16 once.
    q = (qkv[:, 0 * C:1 * C] * scale).astype(jnp.bfloat16)
    k = qkv[:, 1 * C:2 * C].astype(jnp.bfloat16)
    v = qkv[:, 2 * C:3 * C].astype(jnp.bfloat16)

    # Head-major layout (n_head, T, hd), built once via static slices + stack
    # (single relayout region; avoids per-head sub-vreg slices inside dot loops).
    def to_heads(t):
        return jnp.stack([t[:, h * hd:(h + 1) * hd] for h in range(n_head)], axis=0)
    qh, kh, vh = to_heads(q), to_heads(k), to_heads(v)

    # Additive causal bias (0 on/below diagonal, -1e30 above), built once, f32,
    # broadcast over heads.
    row = lax.broadcasted_iota(jnp.int32, (T, T), 0)
    col = lax.broadcasted_iota(jnp.int32, (T, T), 1)
    causal_bias = jnp.where(col <= row, 0.0, -1e30).astype(jnp.float32)

    # ---- Batched QK^T over heads: (n_head, T, T), f32 accumulation on the MXU.
    s = jnp.einsum('hqd,hkd->hqk', qh, kh,
                   preferred_element_type=jnp.float32) + causal_bias[None, :, :]
    m = jnp.max(s, axis=-1, keepdims=True)
    p = jnp.exp(s - m)                             # unnormalized probs, f32
    denom = jnp.sum(p, axis=-1, keepdims=True)     # (n_head, T, 1)

    # ---- Batched P @ V: (n_head, T, hd); normalization deferred to one small
    # multiply with an EUP reciprocal instead of (T, T) divides.
    y = jnp.einsum('hqk,hkd->hqd', p.astype(jnp.bfloat16), vh,
                   preferred_element_type=jnp.float32)
    y = (y * pl.reciprocal(denom, approx=True)).astype(jnp.bfloat16)

    # Merge heads back to (T, C) once (lane concat of static head strips).
    y_flat = jnp.concatenate([y[h] for h in range(n_head)], axis=-1)

    # ---- Output projection: (T, C) @ (C, C) + (1, C). bf16 operands, f32 accum.
    out = jnp.dot(y_flat, w_proj_ref[...], preferred_element_type=jnp.float32) \
          + b_proj_ref[...]
    out = out.astype(o_ref.dtype)

    if lane_dense_out:
        # Present a lane-dense (rows, 128) slab so the writeback is unmasked vst.
        o_ref[0] = out.reshape(o_ref.shape[1], o_ref.shape[2])
    else:
        o_ref[0] = out


def _derive_vmem_limit_bytes(T, C, n_head, out_itemsize):
    """Per-grid-step VMEM footprint estimate, capped at 3/4 of physical VMEM."""
    bf16, f32 = 2, 4
    x_blocks = 2 * T * C * bf16                         # double-buffered x block
    out_blocks = 2 * T * C * out_itemsize               # double-buffered out block
    weights = 2 * ((3 * C * C + C * C) * bf16 + 4 * C * f32)
    proj_tmp = T * 3 * C * f32 + 6 * T * C * bf16 + 2 * T * C * f32
    attn_tmp = (1 + 2 * n_head) * T * T * f32 + 2 * n_head * T * (C // n_head) * f32
    est = int(1.5 * (x_blocks + out_blocks + weights + proj_tmp + attn_tmp)) + (4 << 20)
    try:
        cap = pltpu.get_tpu_info().vmem_capacity_bytes   # 128 MiB v5e/v6e, 64 MiB v7x
    except Exception:
        cap = 64 << 20
    return max(32 << 20, min(est, (cap * 3) // 4))


def causal_self_attention(x, w_attn, b_attn, w_proj, b_proj, *, n_head):
    B, T, C = x.shape
    assert C % n_head == 0
    out_dtype = x.dtype

    # Boundary casts: activations and weights to bf16 ONCE (halves DMA + VMEM for
    # the resident weights and the per-step x blocks); biases stay f32.
    x_bf = x.astype(jnp.bfloat16)
    w_attn_bf = w_attn.astype(jnp.bfloat16)
    w_proj_bf = w_proj.astype(jnp.bfloat16)
    b_attn_f32 = b_attn.astype(jnp.float32)
    b_proj_f32 = b_proj.astype(jnp.float32)

    # Lane-dense output slab when C < 128-aligned but T*C is (wrapper reshape is
    # a free contiguous relabel).  With C % 128 == 0 the natural layout is
    # already lane-dense and no in-kernel relayout is needed.
    lane_dense = (C % 128 != 0) and ((T * C) % 128 == 0)
    if lane_dense:
        out_rows = (T * C) // 128
        out_shape = jax.ShapeDtypeStruct((B, out_rows, 128), out_dtype)
        out_spec = pl.BlockSpec((1, out_rows, 128), lambda b: (b, 0, 0))
    else:
        out_shape = jax.ShapeDtypeStruct((B, T, C), out_dtype)
        out_spec = pl.BlockSpec((1, T, C), lambda b: (b, 0, 0))

    kernel = functools.partial(causal_attn_kernel, n_head=n_head,
                               lane_dense_out=lane_dense)

    out = pl.pallas_call(
        kernel,
        out_shape=out_shape,
        grid_spec=pltpu.PrefetchScalarGridSpec(
            num_scalar_prefetch=0,
            grid=(B,),
            in_specs=[
                pl.BlockSpec((1, T, C), lambda b: (b, 0, 0)),        # x (per batch)
                pl.BlockSpec((C, 3 * C), lambda b: (0, 0)),          # W_attn (resident, bf16)
                pl.BlockSpec((1, 3 * C), lambda b: (0, 0)),          # b_attn (resident)
                pl.BlockSpec((C, C), lambda b: (0, 0)),              # W_proj (resident, bf16)
                pl.BlockSpec((1, C), lambda b: (0, 0)),              # b_proj (resident)
            ],
            out_specs=out_spec,
        ),
        compiler_params=pltpu.CompilerParams(
            dimension_semantics=("parallel",),   # B >= 2 -> both TCs on v7x / megacore
            vmem_limit_bytes=_derive_vmem_limit_bytes(
                T, C, n_head, jnp.dtype(out_dtype).itemsize)),
    )(x_bf, w_attn_bf, b_attn_f32, w_proj_bf, b_proj_f32)

    if lane_dense:
        out = out.reshape(B, T, C)               # contiguous relabel - free
    return out


def reference_attention(x, w_attn, b_attn, w_proj, b_proj, *, n_head):
    """Pure-JAX (f32) mirror of the PyTorch forward pass for correctness checking."""
    B, T, C = x.shape
    hd = C // n_head
    qkv = x @ w_attn + b_attn[0]
    q, k, v = jnp.split(qkv, 3, axis=-1)
    to_heads = lambda t: t.reshape(B, T, n_head, hd).transpose(0, 2, 1, 3)
    q, k, v = map(to_heads, (q, k, v))
    s = jnp.einsum('bhqd,bhkd->bhqk', q, k) / jnp.sqrt(jnp.float32(hd))
    mask = jnp.tril(jnp.ones((T, T), dtype=bool))
    s = jnp.where(mask, s, -jnp.inf)
    p = jax.nn.softmax(s, axis=-1)
    y = jnp.einsum('bhqk,bhkd->bhqd', p, v).transpose(0, 2, 1, 3).reshape(B, T, C)
    return y @ w_proj + b_proj[0]


if __name__ == "__main__":
    # Small GPT-ish config: n_embd=128 (lane-aligned like GPT-2's 768), n_head=4,
    # block_size (T) = 128, batch = 2.
    B, T, C, n_head = 2, 128, 128, 4

    key = jax.random.PRNGKey(0)
    kx, k1, k2, k3, k4 = jax.random.split(key, 5)

    # Deterministic param init (PyTorch Linear-style uniform +-1/sqrt(fan_in)).
    bound = 1.0 / (C ** 0.5)
    x = jax.random.normal(kx, (B, T, C), dtype=jnp.float32)
    w_attn = jax.random.uniform(k1, (C, 3 * C), jnp.float32, -bound, bound)
    b_attn = jax.random.uniform(k2, (1, 3 * C), jnp.float32, -bound, bound)
    w_proj = jax.random.uniform(k3, (C, C), jnp.float32, -bound, bound)
    b_proj = jax.random.uniform(k4, (1, C), jnp.float32, -bound, bound)

    out = causal_self_attention(x, w_attn, b_attn, w_proj, b_proj, n_head=n_head)
    out = jax.block_until_ready(out)

    ref = reference_attention(x, w_attn, b_attn, w_proj, b_proj, n_head=n_head)
    assert out.shape == (B, T, C)
    # bf16 matmul operands + approx reciprocal -> looser tolerance than pure f32.
    assert jnp.allclose(out, ref, rtol=2e-2, atol=2e-2), "mismatch vs JAX reference"

    print("KERNEL_OK")
</pallas_src>

<mosaic_0001>
module attributes {stable_mosaic.version = 11 : i64} {
  func.func @causal_attn_kernel(%arg0: i32, %arg1: memref<1x128x128xbf16, #tpu.memory_space<vmem>>, %arg2: memref<128x384xbf16, #tpu.memory_space<vmem>>, %arg3: memref<1x384xf32, #tpu.memory_space<vmem>>, %arg4: memref<128x128xbf16, #tpu.memory_space<vmem>>, %arg5: memref<1x128xf32, #tpu.memory_space<vmem>>, %arg6: memref<1x128x128xf32, #tpu.memory_space<vmem>>) attributes {dimension_semantics = [#tpu.dimension_semantics<parallel>], iteration_bounds = array<i64: 2>, scalar_prefetch = 0 : i64, scratch_operands = 0 : i64, tpu.core_type = #tpu.core_type<tc>, window_params = [{transform_indices = @transform_0, window_bounds = array<i64: 1, 128, 128>}, {pipeline_mode = #tpu.pipeline_mode<synchronous>, transform_indices = @transform_1, window_bounds = array<i64: 128, 384>}, {pipeline_mode = #tpu.pipeline_mode<synchronous>, transform_indices = @transform_2, window_bounds = array<i64: 1, 384>}, {pipeline_mode = #tpu.pipeline_mode<synchronous>, transform_indices = @transform_3, window_bounds = array<i64: 128, 128>}, {pipeline_mode = #tpu.pipeline_mode<synchronous>, transform_indices = @transform_4, window_bounds = array<i64: 1, 128>}, {transform_indices = @transform_5, window_bounds = array<i64: 1, 128, 128>}]} {
    %c0 = arith.constant 0 : index
    %c0_0 = arith.constant 0 : index
    %c0_1 = arith.constant 0 : index
    %0 = vector.load %arg1[%c0, %c0_0, %c0_1] : memref<1x128x128xbf16, #tpu.memory_space<vmem>>, vector<1x128x128xbf16>
    %1 = vector.shape_cast %0 : vector<1x128x128xbf16> to vector<128x128xbf16>
    %c0_2 = arith.constant 0 : index
    %c0_3 = arith.constant 0 : index
    %2 = vector.load %arg2[%c0_2, %c0_3] : memref<128x384xbf16, #tpu.memory_space<vmem>>, vector<128x384xbf16>
    %cst = arith.constant dense<0.000000e+00> : vector<128x384xf32>
    %3 = tpu.matmul %1, %2, %cst {dimension_numbers = #tpu.dot_dimension_numbers<[1], [0], [0], [1], [0, 0, 1, 1], [], []>} : vector<128x128xbf16>, vector<128x384xbf16>, vector<128x384xf32> -> vector<128x384xf32>
    %c0_4 = arith.constant 0 : index
    %c0_5 = arith.constant 0 : index
    %4 = vector.load %arg3[%c0_4, %c0_5] : memref<1x384xf32, #tpu.memory_space<vmem>>, vector<1x384xf32>
    %5 = vector.broadcast %4 : vector<1x384xf32> to vector<128x384xf32>
    %6 = arith.addf %3, %5 : vector<128x384xf32>
    %7 = vector.extract_strided_slice %6 {offsets = [0, 0], sizes = [128, 128], strides = [1, 1]} : vector<128x384xf32> to vector<128x128xf32>
    %cst_6 = arith.constant 0.176776692 : f32
    %8 = vector.broadcast %cst_6 : f32 to vector<128x128xf32>
    %9 = arith.mulf %7, %8 : vector<128x128xf32>
    %10 = arith.truncf %9 : vector<128x128xf32> to vector<128x128xbf16>
    %11 = vector.extract_strided_slice %6 {offsets = [0, 128], sizes = [128, 128], strides = [1, 1]} : vector<128x384xf32> to vector<128x128xf32>
    %12 = arith.truncf %11 : vector<128x128xf32> to vector<128x128xbf16>
    %13 = vector.extract_strided_slice %6 {offsets = [0, 256], sizes = [128, 128], strides = [1, 1]} : vector<128x384xf32> to vector<128x128xf32>
    %14 = arith.truncf %13 : vector<128x128xf32> to vector<128x128xbf16>
    %15 = vector.extract_strided_slice %10 {offsets = [0, 0], sizes = [128, 32], strides = [1, 1]} : vector<128x128xbf16> to vector<128x32xbf16>
    %16 = vector.extract_strided_slice %10 {offsets = [0, 32], sizes = [128, 32], strides = [1, 1]} : vector<128x128xbf16> to vector<128x32xbf16>
    %17 = vector.extract_strided_slice %10 {offsets = [0, 64], sizes = [128, 32], strides = [1, 1]} : vector<128x128xbf16> to vector<128x32xbf16>
    %18 = vector.extract_strided_slice %10 {offsets = [0, 96], sizes = [128, 32], strides = [1, 1]} : vector<128x128xbf16> to vector<128x32xbf16>
    %19 = vector.shape_cast %15 : vector<128x32xbf16> to vector<1x128x32xbf16>
    %20 = vector.shape_cast %16 : vector<128x32xbf16> to vector<1x128x32xbf16>
    %21 = vector.shape_cast %17 : vector<128x32xbf16> to vector<1x128x32xbf16>
    %22 = vector.shape_cast %18 : vector<128x32xbf16> to vector<1x128x32xbf16>
    %23 = tpu.concatenate %19, %20, %21, %22 in 0 : vector<1x128x32xbf16>, vector<1x128x32xbf16>, vector<1x128x32xbf16>, vector<1x128x32xbf16> -> vector<4x128x32xbf16>
    %24 = vector.extract_strided_slice %12 {offsets = [0, 0], sizes = [128, 32], strides = [1, 1]} : vector<128x128xbf16> to vector<128x32xbf16>
    %25 = vector.extract_strided_slice %12 {offsets = [0, 32], sizes = [128, 32], strides = [1, 1]} : vector<128x128xbf16> to vector<128x32xbf16>
    %26 = vector.extract_strided_slice %12 {offsets = [0, 64], sizes = [128, 32], strides = [1, 1]} : vector<128x128xbf16> to vector<128x32xbf16>
    %27 = vector.extract_strided_slice %12 {offsets = [0, 96], sizes = [128, 32], strides = [1, 1]} : vector<128x128xbf16> to vector<128x32xbf16>
    %28 = vector.shape_cast %24 : vector<128x32xbf16> to vector<1x128x32xbf16>
    %29 = vector.shape_cast %25 : vector<128x32xbf16> to vector<1x128x32xbf16>
    %30 = vector.shape_cast %26 : vector<128x32xbf16> to vector<1x128x32xbf16>
    %31 = vector.shape_cast %27 : vector<128x32xbf16> to vector<1x128x32xbf16>
    %32 = tpu.concatenate %28, %29, %30, %31 in 0 : vector<1x128x32xbf16>, vector<1x128x32xbf16>, vector<1x128x32xbf16>, vector<1x128x32xbf16> -> vector<4x128x32xbf16>
    %33 = vector.extract_strided_slice %14 {offsets = [0, 0], sizes = [128, 32], strides = [1, 1]} : vector<128x128xbf16> to vector<128x32xbf16>
    %34 = vector.extract_strided_slice %14 {offsets = [0, 32], sizes = [128, 32], strides = [1, 1]} : vector<128x128xbf16> to vector<128x32xbf16>
    %35 = vector.extract_strided_slice %14 {offsets = [0, 64], sizes = [128, 32], strides = [1, 1]} : vector<128x128xbf16> to vector<128x32xbf16>
    %36 = vector.extract_strided_slice %14 {offsets = [0, 96], sizes = [128, 32], strides = [1, 1]} : vector<128x128xbf16> to vector<128x32xbf16>
    %37 = vector.shape_cast %33 : vector<128x32xbf16> to vector<1x128x32xbf16>
    %38 = vector.shape_cast %34 : vector<128x32xbf16> to vector<1x128x32xbf16>
    %39 = vector.shape_cast %35 : vector<128x32xbf16> to vector<1x128x32xbf16>
    %40 = vector.shape_cast %36 : vector<128x32xbf16> to vector<1x128x32xbf16>
    %41 = tpu.concatenate %37, %38, %39, %40 in 0 : vector<1x128x32xbf16>, vector<1x128x32xbf16>, vector<1x128x32xbf16>, vector<1x128x32xbf16> -> vector<4x128x32xbf16>
    %42 = tpu.iota {dimensions = array<i32: 0>} : vector<128x128xi32>
    %43 = tpu.iota {dimensions = array<i32: 1>} : vector<128x128xi32>
    %44 = arith.cmpi sle, %43, %42 : vector<128x128xi32>
    %cst_7 = arith.constant 0.000000e+00 : f32
    %cst_8 = arith.constant -1.000000e+30 : f32
    %45 = vector.broadcast %cst_7 : f32 to vector<128x128xf32>
    %46 = vector.broadcast %cst_8 : f32 to vector<128x128xf32>
    %47 = arith.select %44, %45, %46 : vector<128x128xi1>, vector<128x128xf32>
    "tpu.trace_start"() <{level = 10 : i32, message = "hqd,hkd->hqk"}> : () -> ()
    %cst_9 = arith.constant dense<0.000000e+00> : vector<4x128x128xf32>
    %48 = tpu.matmul %23, %32, %cst_9 {dimension_numbers = #tpu.dot_dimension_numbers<[2], [2], [1], [1], [0, 0, 0, 1, 1, 1], [0], [0]>} : vector<4x128x32xbf16>, vector<4x128x32xbf16>, vector<4x128x128xf32> -> vector<4x128x128xf32>
    "tpu.trace_stop"() : () -> ()
    %49 = vector.shape_cast %47 : vector<128x128xf32> to vector<1x128x128xf32>
    %50 = vector.broadcast %49 : vector<1x128x128xf32> to vector<4x128x128xf32>
    %51 = arith.addf %48, %50 : vector<4x128x128xf32>
    %cst_10 = arith.constant dense<0xFF800000> : vector<4x128xf32>
    %52 = vector.multi_reduction <maximumf>, %51, %cst_10 [2] : vector<4x128x128xf32> to vector<4x128xf32>
    %53 = vector.shape_cast %52 : vector<4x128xf32> to vector<4x128x1xf32>
    %54 = vector.broadcast %53 : vector<4x128x1xf32> to vector<4x128x128xf32>
    %55 = arith.subf %51, %54 : vector<4x128x128xf32>
    %56 = math.exp %55 : vector<4x128x128xf32>
    %cst_11 = arith.constant dense<0.000000e+00> : vector<4x128xf32>
    %57 = vector.multi_reduction <add>, %56, %cst_11 [2] : vector<4x128x128xf32> to vector<4x128xf32>
    %58 = vector.shape_cast %57 : vector<4x128xf32> to vector<4x128x1xf32>
    %59 = arith.truncf %56 : vector<4x128x128xf32> to vector<4x128x128xbf16>
    "tpu.trace_start"() <{level = 10 : i32, message = "hqk,hkd->hqd"}> : () -> ()
    %cst_12 = arith.constant dense<0.000000e+00> : vector<4x128x32xf32>
    %60 = tpu.matmul %59, %41, %cst_12 {dimension_numbers = #tpu.dot_dimension_numbers<[2], [1], [1], [2], [0, 0, 0, 1, 1, 2], [0], [0]>} : vector<4x128x128xbf16>, vector<4x128x32xbf16>, vector<4x128x32xf32> -> vector<4x128x32xf32>
    "tpu.trace_stop"() : () -> ()
    %61 = tpu.reciprocal %58 {approx = true} : vector<4x128x1xf32> -> vector<4x128x1xf32>
    %62 = vector.broadcast %61 : vector<4x128x1xf32> to vector<4x128x32xf32>
    %63 = arith.mulf %60, %62 : vector<4x128x32xf32>
    %64 = arith.truncf %63 : vector<4x128x32xf32> to vector<4x128x32xbf16>
    %65 = vector.extract_strided_slice %64 {offsets = [0, 0, 0], sizes = [1, 128, 32], strides = [1, 1, 1]} : vector<4x128x32xbf16> to vector<1x128x32xbf16>
    %66 = vector.shape_cast %65 : vector<1x128x32xbf16> to vector<128x32xbf16>
    %67 = vector.extract_strided_slice %64 {offsets = [1, 0, 0], sizes = [1, 128, 32], strides = [1, 1, 1]} : vector<4x128x32xbf16> to vector<1x128x32xbf16>
    %68 = vector.shape_cast %67 : vector<1x128x32xbf16> to vector<128x32xbf16>
    %69 = vector.extract_strided_slice %64 {offsets = [2, 0, 0], sizes = [1, 128, 32], strides = [1, 1, 1]} : vector<4x128x32xbf16> to vector<1x128x32xbf16>
    %70 = vector.shape_cast %69 : vector<1x128x32xbf16> to vector<128x32xbf16>
    %71 = vector.extract_strided_slice %64 {offsets = [3, 0, 0], sizes = [1, 128, 32], strides = [1, 1, 1]} : vector<4x128x32xbf16> to vector<1x128x32xbf16>
    %72 = vector.shape_cast %71 : vector<1x128x32xbf16> to vector<128x32xbf16>
    %73 = tpu.concatenate %66, %68, %70, %72 in 1 : vector<128x32xbf16>, vector<128x32xbf16>, vector<128x32xbf16>, vector<128x32xbf16> -> vector<128x128xbf16>
    %c0_13 = arith.constant 0 : index
    %c0_14 = arith.constant 0 : index
    %74 = vector.load %arg4[%c0_13, %c0_14] : memref<128x128xbf16, #tpu.memory_space<vmem>>, vector<128x128xbf16>
    %cst_15 = arith.constant dense<0.000000e+00> : vector<128x128xf32>
    %75 = tpu.matmul %73, %74, %cst_15 {dimension_numbers = #tpu.dot_dimension_numbers<[1], [0], [0], [1], [0, 0, 1, 1], [], []>} : vector<128x128xbf16>, vector<128x128xbf16>, vector<128x128xf32> -> vector<128x128xf32>
    %c0_16 = arith.constant 0 : index
    %c0_17 = arith.constant 0 : index
    %76 = vector.load %arg5[%c0_16, %c0_17] : memref<1x128xf32, #tpu.memory_space<vmem>>, vector<1x128xf32>
    %77 = vector.broadcast %76 : vector<1x128xf32> to vector<128x128xf32>
    %78 = arith.addf %75, %77 : vector<128x128xf32>
    %c0_18 = arith.constant 0 : index
    %c0_19 = arith.constant 0 : index
    %c0_20 = arith.constant 0 : index
    %79 = vector.load %arg6[%c0_18, %c0_19, %c0_20] : memref<1x128x128xf32, #tpu.memory_space<vmem>>, vector<1x128x128xf32>
    %80 = vector.shape_cast %79 : vector<1x128x128xf32> to vector<128x128xf32>
    %81 = vector.shape_cast %78 : vector<128x128xf32> to vector<1x128x128xf32>
    tpu.vector_store %arg6[%c0_18, %c0_19, %c0_20], %81 {strides = array<i32>} : memref<1x128x128xf32, #tpu.memory_space<vmem>>, vector<1x128x128xf32>,
    return
  }
  func.func @transform_0(%arg0: i32) -> (i32, i32, i32) {
    %c0_i32 = arith.constant 0 : i32
    %c0_i32_0 = arith.constant 0 : i32
    %c0_i32_1 = arith.constant 0 : i32
    return %arg0, %c0_i32, %c0_i32_0 : i32, i32, i32
  }
  func.func @transform_1(%arg0: i32) -> (i32, i32) {
    %c0_i32 = arith.constant 0 : i32
    %c0_i32_0 = arith.constant 0 : i32
    %c0_i32_1 = arith.constant 0 : i32
    return %c0_i32, %c0_i32_0 : i32, i32
  }
  func.func @transform_2(%arg0: i32) -> (i32, i32) {
    %c0_i32 = arith.constant 0 : i32
    %c0_i32_0 = arith.constant 0 : i32
    %c0_i32_1 = arith.constant 0 : i32
    return %c0_i32, %c0_i32_0 : i32, i32
  }
  func.func @transform_3(%arg0: i32) -> (i32, i32) {
    %c0_i32 = arith.constant 0 : i32
    %c0_i32_0 = arith.constant 0 : i32
    %c0_i32_1 = arith.constant 0 : i32
    return %c0_i32, %c0_i32_0 : i32, i32
  }
  func.func @transform_4(%arg0: i32) -> (i32, i32) {
    %c0_i32 = arith.constant 0 : i32
    %c0_i32_0 = arith.constant 0 : i32
    %c0_i32_1 = arith.constant 0 : i32
    return %c0_i32, %c0_i32_0 : i32, i32
  }
  func.func @transform_5(%arg0: i32) -> (i32, i32, i32) {
    %c0_i32 = arith.constant 0 : i32
    %c0_i32_0 = arith.constant 0 : i32
    %c0_i32_1 = arith.constant 0 : i32
    return %arg0, %c0_i32, %c0_i32_0 : i32, i32, i32
  }
}

</mosaic_0001>

<llo_original>
// kernel: tpu_custom_call.1
$region0: #{tpu_custom_call.1}
  #allocation0 [shape = 'u32[]', space=smem, size = 0x4, offset = 0x4, fixed_abs, tag = 'smem constant byte address 0x4 - core index']
  #allocation1 [shape = 'u32[72,128]{1,0:T(1,128)}', space=vmem, size = 0x9000, scoped, tag = 'internal scratch']
  %s0 = inlined_call_operand.hbm [shape: bf16[2,128,128], index: 0, kind: input, shape index: {}]
  %s1 = inlined_call_operand.hbm [shape: bf16[128,384], index: 1, kind: input, shape index: {}]
  %s2 = inlined_call_operand.hbm [shape: f32[1,384], index: 2, kind: input, shape index: {}]
  %s3 = inlined_call_operand.hbm [shape: bf16[128,128], index: 3, kind: input, shape index: {}]
  %s4 = inlined_call_operand.vmem [shape: f32[1,128], index: 4, kind: input, shape index: {}]
  %s5 = inlined_call_operand.hbm [shape: f32[2,128,128], index: 5, kind: output, shape index: {}]
  %s6 = sld [smem:[#allocation0]]
  $region69: #{tpu_custom_call.1} parent=0
    _
  %s8 = ssub.s32 1, %s6
  %s9 = scalar_select 0, %s8, %s6
  $region1: #{tpu_custom_call.1} parent=0
    #allocation2 [shape = 'u8[65536]{0}', space=vmem, size = 0x10000, scoped, tag = 'input window, operand 0']
    #allocation3 [shape = 's32[2]{0}', space=sflag, size = 0x8, scoped, tag = 'scoped memory for tpu_custom_call.1']
    #allocation4 [shape = 's32[2]{0}', space=sflag, size = 0x8, scoped, tag = 'scoped memory for tpu_custom_call.1']
    #allocation5 [shape = 'u8[98304]{0}', space=vmem, size = 0x18000, scoped, tag = 'input window, operand 1, single buffered']
    #allocation6 [shape = 's32[1]{0}', space=sflag, size = 0x4, scoped, tag = 'scoped memory for tpu_custom_call.1']
    #allocation7 [shape = 'u8[1536]{0}', space=vmem, size = 0x800, scoped, tag = 'input window, operand 2, single buffered']
    #allocation8 [shape = 'u8[32768]{0}', space=vmem, size = 0x8000, scoped, tag = 'input window, operand 3, single buffered']
    #allocation9 [shape = 's32[1]{0}', space=sflag, size = 0x4, scoped, tag = 'scoped memory for tpu_custom_call.1']
    #allocation10 [shape = 'u8[131072]{0}', space=vmem, size = 0x20000, scoped, tag = 'output window, operand 0']
    %10 = vsyncpa [#allocation3], 0
    %s11 = scalar_lea.sflag [#allocation3], 1
    %12 = vsyncpa %s11, 0
    %13 = vsyncpa [#allocation6], 0
    %14 = vsyncpa [#allocation9], 0
    %15 = vsyncpa [#allocation4], 0
    %s16 = scalar_lea.sflag [#allocation4], 1
    %17 = vsyncpa %s16, 0
    loop: start=0, step=1, limit=4
    $region2: #{tpu_custom_call.1} parent=1 // loop_pre_header
      _
    $region3: #{tpu_custom_call.1} parent=1 // loop_header
      %s19 = sphi 0, %s23
      %p20 = scmp.ge.s32.totalorder %s19, 4
      %s29 = sphi 0, %s31
      %s32 = sphi 0, %s29
      %s33 = sphi 0, %s32
      %s49 = sphi 0, %s33
      %s53 = sphi 0, %s53
      %s55 = sphi 0, %s53
      %s56 = sphi 0, %s55
      %s70 = sphi 0, %s56
      %s74 = sphi 0, %s74
      %s76 = sphi 0, %s74
      %s77 = sphi 0, %s76
      %s91 = sphi 0, %s77
      %s95 = sphi 0, %s95
      %s97 = sphi 0, %s95
      %s98 = sphi 0, %s97
      %s112 = sphi 0, %s98
      %s116 = sphi 0, %s116
      %s118 = sphi 0, %s116
      %s119 = sphi 0, %s118
      %s133 = sphi 0, %s119
      %s139 = sphi 0, %s141
      %s142 = sphi 0, %s139
      %s143 = sphi 0, %s142
      %s159 = sphi 0, %s143
    $region4: #{tpu_custom_call.1} parent=1 // loop_header_branch
      %22 = sbr.rel (%p20) target = $region8
    $region5: #{tpu_custom_call.1} parent=1 // loop_body
      %s24 = ssub.s32 %s19, 1
      %s25 = ssub.s32 %s19, 2
      %s26 = sadd.s32 %s19, 1
      %s27 = ssub.s32 %s19, %s26
      %p28 = scmp.eq.s32.totalorder %s27, 0
      %s30 = sadd.s32 %s29, 1
      %s31 = scalar_select %p28, %s29, %s30
      %p34 = pneg %p28
      %p35 = scmp.eq.s32.totalorder %s19, 1
      %p36 = por %p34, %p35
      %p37 = scmp.ne.s32.totalorder %s29, %s32
      %p38 = scmp.eq.s32.totalorder %s19, 0
      %p39 = por %p37, %p38
      %p40 = scmp.ne.s32.totalorder %s29, %s32
      %p41 = scmp.eq.s32.totalorder %s24, 1
      %p42 = por %p40, %p41
      %p43 = scmp.ne.s32.totalorder %s32, %s33
      %p44 = scmp.eq.s32.totalorder %s24, 0
      %p45 = por %p43, %p44
      %p46 = scmp.ne.s32.totalorder %s32, %s33
      %p47 = scmp.eq.s32.totalorder %s25, 1
      %p48 = por %p46, %p47
      %p50 = scmp.ne.s32.totalorder %s33, %s49
      %p51 = scmp.eq.s32.totalorder %s25, 0
      %p52 = por %p50, %p51
      %s54 = sadd.s32 %s53, 1
      %p57 = scmp.eq.s32.totalorder %s19, 1
      %p58 = scmp.ne.s32.totalorder %s53, %s55
      %p59 = scmp.eq.s32.totalorder %s19, 0
      %p60 = por %p58, %p59
      %p61 = scmp.ne.s32.totalorder %s53, %s55
      %p62 = scmp.eq.s32.totalorder %s24, 1
      %p63 = por %p61, %p62
      %p64 = scmp.ne.s32.totalorder %s55, %s56
      %p65 = scmp.eq.s32.totalorder %s24, 0
      %p66 = por %p64, %p65
      %p67 = scmp.ne.s32.totalorder %s55, %s56
      %p68 = scmp.eq.s32.totalorder %s25, 1
      %p69 = por %p67, %p68
      %p71 = scmp.ne.s32.totalorder %s56, %s70
      %p72 = scmp.eq.s32.totalorder %s25, 0
      %p73 = por %p71, %p72
      %s75 = sadd.s32 %s74, 1
      %p78 = scmp.eq.s32.totalorder %s19, 1
      %p79 = scmp.ne.s32.totalorder %s74, %s76
      %p80 = scmp.eq.s32.totalorder %s19, 0
      %p81 = por %p79, %p80
      %p82 = scmp.ne.s32.totalorder %s74, %s76
      %p83 = scmp.eq.s32.totalorder %s24, 1
      %p84 = por %p82, %p83
      %p85 = scmp.ne.s32.totalorder %s76, %s77
      %p86 = scmp.eq.s32.totalorder %s24, 0
      %p87 = por %p85, %p86
      %p88 = scmp.ne.s32.totalorder %s76, %s77
      %p89 = scmp.eq.s32.totalorder %s25, 1
      %p90 = por %p88, %p89
      %p92 = scmp.ne.s32.totalorder %s77, %s91
      %p93 = scmp.eq.s32.totalorder %s25, 0
      %p94 = por %p92, %p93
      %s96 = sadd.s32 %s95, 1
      %p99 = scmp.eq.s32.totalorder %s19, 1
      %p100 = scmp.ne.s32.totalorder %s95, %s97
      %p101 = scmp.eq.s32.totalorder %s19, 0
      %p102 = por %p100, %p101
      %p103 = scmp.ne.s32.totalorder %s95, %s97
      %p104 = scmp.eq.s32.totalorder %s24, 1
      %p105 = por %p103, %p104
      %p106 = scmp.ne.s32.totalorder %s97, %s98
      %p107 = scmp.eq.s32.totalorder %s24, 0
      %p108 = por %p106, %p107
      %p109 = scmp.ne.s32.totalorder %s97, %s98
      %p110 = scmp.eq.s32.totalorder %s25, 1
      %p111 = por %p109, %p110
      %p113 = scmp.ne.s32.totalorder %s98, %s112
      %p114 = scmp.eq.s32.totalorder %s25, 0
      %p115 = por %p113, %p114
      %s117 = sadd.s32 %s116, 1
      %p120 = scmp.eq.s32.totalorder %s19, 1
      %p121 = scmp.ne.s32.totalorder %s116, %s118
      %p122 = scmp.eq.s32.totalorder %s19, 0
      %p123 = por %p121, %p122
      %p124 = scmp.ne.s32.totalorder %s116, %s118
      %p125 = scmp.eq.s32.totalorder %s24, 1
      %p126 = por %p124, %p125
      %p127 = scmp.ne.s32.totalorder %s118, %s119
      %p128 = scmp.eq.s32.totalorder %s24, 0
      %p129 = por %p127, %p128
      %p130 = scmp.ne.s32.totalorder %s118, %s119
      %p131 = scmp.eq.s32.totalorder %s25, 1
      %p132 = por %p130, %p131
      %p134 = scmp.ne.s32.totalorder %s119, %s133
      %p135 = scmp.eq.s32.totalorder %s25, 0
      %p136 = por %p134, %p135
      %s137 = ssub.s32 %s19, %s26
      %p138 = scmp.eq.s32.totalorder %s137, 0
      %s140 = sadd.s32 %s139, 1
      %s141 = scalar_select %p138, %s139, %s140
      %p144 = pneg %p138
      %p145 = scmp.eq.s32.totalorder %s19, 1
      %p146 = por %p144, %p145
      %p147 = scmp.ne.s32.totalorder %s139, %s142
      %p148 = scmp.eq.s32.totalorder %s19, 0
      %p149 = por %p147, %p148
      %p150 = scmp.ne.s32.totalorder %s139, %s142
      %p151 = scmp.eq.s32.totalorder %s24, 1
      %p152 = por %p150, %p151
      %p153 = scmp.ne.s32.totalorder %s142, %s143
      %p154 = scmp.eq.s32.totalorder %s24, 0
      %p155 = por %p153, %p154
      %p156 = scmp.ne.s32.totalorder %s142, %s143
      %p157 = scmp.eq.s32.totalorder %s25, 1
      %p158 = por %p156, %p157
      %p160 = scmp.ne.s32.totalorder %s143, %s159
      %p161 = scmp.eq.s32.totalorder %s25, 0
      %p162 = por %p160, %p161
      %p163 = scmp.le.s32.totalorder 1, %s19
      %p164 = scmp.lt.s32.totalorder %s19, 3
      %p165 = pnand %p163, %p164
      %p166 = pneg %p165
      // Predicated region
      $region9: #{tpu_custom_call.1} parent=5 // pred_check
        _
      $region10: #{tpu_custom_call.1} parent=5 // pred_check_branch
        %168 = sbr.rel (%p165) target = $region12
      $region11: #{tpu_custom_call.1} parent=5 // pred_region
        %s169 = ssub.s32 %s19, 1
        // Predicated region
        $region13: #{tpu_custom_call.1} parent=11 // pred_check
          %p170 = pneg %p66
        $region14: #{tpu_custom_call.1} parent=11 // pred_check_branch
          %172 = sbr.rel (%p170) target = $region16
        $region15: #{tpu_custom_call.1} parent=11 // pred_region
          %174 = vsyncadd [#allocation6], 0
          %s175 = sshll.u32 %s1, 4
          %s176 = int_to_ptr.hbm [resolvable:$true] %s175
          %s177 = sshll.u32 [#allocation5], 4
          %s178 = int_to_ptr.vmem [resolvable:$true] %s177
          %183 = dma.hbm_to_vmem [thread:$0]  %s176, 3072, %s178, [#allocation6], 192, 192, 12
        $region16: #{tpu_custom_call.1} parent=11 // pred_fallthru
          _
        // Predicated region
        $region17: #{tpu_custom_call.1} parent=11 // pred_check
          %p184 = pneg %p87
        $region18: #{tpu_custom_call.1} parent=11 // pred_check_branch
          %186 = sbr.rel (%p184) target = $region20
        $region19: #{tpu_custom_call.1} parent=11 // pred_region
          %188 = vsyncadd [#allocation6], 0
          %s190 = sshll.u32 %s2, 4
          %s191 = int_to_ptr.hbm [resolvable:$true] %s190
          %s192 = sshll.u32 [#allocation7], 4
          %s193 = int_to_ptr.vmem [resolvable:$true] %s192
          %195 = dma.hbm_to_vmem [thread:$0]  %s191, 48, %s193, [#allocation6]
        $region20: #{tpu_custom_call.1} parent=11 // pred_fallthru
          _
        // Predicated region
        $region21: #{tpu_custom_call.1} parent=11 // pred_check
          %p196 = pneg %p108
        $region22: #{tpu_custom_call.1} parent=11 // pred_check_branch
          %198 = sbr.rel (%p196) target = $region24
        $region23: #{tpu_custom_call.1} parent=11 // pred_region
          %200 = vsyncadd [#allocation9], 0
          %s201 = sshll.u32 %s3, 4
          %s202 = int_to_ptr.hbm [resolvable:$true] %s201
          %s203 = sshll.u32 [#allocation8], 4
          %s204 = int_to_ptr.vmem [resolvable:$true] %s203
          %209 = dma.hbm_to_vmem [thread:$0]  %s202, 1024, %s204, [#allocation9], 64, 64, 4
        $region24: #{tpu_custom_call.1} parent=11 // pred_fallthru
          _
        // Predicated region
        $region25: #{tpu_custom_call.1} parent=11 // pred_check
          %p210 = pneg %p129
        $region26: #{tpu_custom_call.1} parent=11 // pred_check_branch
          %212 = sbr.rel (%p210) target = $region28
        $region27: #{tpu_custom_call.1} parent=11 // pred_region
          _
        $region28: #{tpu_custom_call.1} parent=11 // pred_fallthru
          _
      $region12: #{tpu_custom_call.1} parent=5 // pred_fallthru
        _
      %p213 = scmp.lt.s32.totalorder %s19, 2
      // Predicated region
      $region29: #{tpu_custom_call.1} parent=5 // pred_check
        %p214 = pneg %p213
      $region30: #{tpu_custom_call.1} parent=5 // pred_check_branch
        %216 = sbr.rel (%p214) target = $region32
      $region31: #{tpu_custom_call.1} parent=5 // pred_region
        // Predicated region
        $region33: #{tpu_custom_call.1} parent=31 // pred_check
          %p217 = pneg %p39
        $region34: #{tpu_custom_call.1} parent=31 // pred_check_branch
          %219 = sbr.rel (%p217) target = $region36
        $region35: #{tpu_custom_call.1} parent=31 // pred_region
          %s220 = sand.u32 %s29, 1
          %s221 = scalar_lea.sflag [#allocation3], %s220
          %s222 = sand.u32 %s29, 1
          %s223 = smul.addr %s222, 64
          %s224 = scalar_lea.vmem [#allocation2], %s223
          %226 = vsyncadd %s221, 0
          %s227 = smul.addr %s19, 16
          %s228 = smul.addr %s227, 4
          %s229 = scalar_lea.hbm %s0, %s228
          %s230 = sshll.u32 %s229, 4
          %s231 = int_to_ptr.hbm [resolvable:$true] %s230
          %s232 = sshll.u32 %s224, 4
          %s233 = int_to_ptr.vmem [resolvable:$true] %s232
          %238 = dma.hbm_to_vmem [thread:$0]  %s231, 1024, %s233, %s221, 64, 64, 4
        $region36: #{tpu_custom_call.1} parent=31 // pred_fallthru
          _
      $region32: #{tpu_custom_call.1} parent=5 // pred_fallthru
        _
      %p239 = scmp.le.s32.totalorder 1, %s19
      %p240 = scmp.lt.s32.totalorder %s19, 3
      %p241 = pnand %p239, %p240
      %p242 = pneg %p241
      // Predicated region
      $region37: #{tpu_custom_call.1} parent=5 // pred_check
        _
      $region38: #{tpu_custom_call.1} parent=5 // pred_check_branch
        %244 = sbr.rel (%p241) target = $region40
      $region39: #{tpu_custom_call.1} parent=5 // pred_region
        %s245 = ssub.s32 %s19, 1
        %s246 = sand.u32 %s32, 1
        %s247 = scalar_lea.sflag [#allocation3], %s246
        %s248 = sand.u32 %s32, 1
        %s249 = smul.addr %s248, 64
        %s250 = scalar_lea.vmem [#allocation2], %s249
        // Predicated region
        $region41: #{tpu_custom_call.1} parent=39 // pred_check
          %p251 = pneg %p45
        $region42: #{tpu_custom_call.1} parent=39 // pred_check_branch
          %253 = sbr.rel (%p251) target = $region44
        $region43: #{tpu_custom_call.1} parent=39 // pred_region
          %255 = dma.done %s247, 1024
        $region44: #{tpu_custom_call.1} parent=39 // pred_fallthru
          _
        // Predicated region
        $region45: #{tpu_custom_call.1} parent=39 // pred_check
          %p256 = pneg %p66
        $region46: #{tpu_custom_call.1} parent=39 // pred_check_branch
          %258 = sbr.rel (%p256) target = $region48
        $region47: #{tpu_custom_call.1} parent=39 // pred_region
          %260 = dma.done [#allocation6], 3072
        $region48: #{tpu_custom_call.1} parent=39 // pred_fallthru
          _
        // Predicated region
        $region49: #{tpu_custom_call.1} parent=39 // pred_check
          %p261 = pneg %p87
        $region50: #{tpu_custom_call.1} parent=39 // pred_check_branch
          %263 = sbr.rel (%p261) target = $region52
        $region51: #{tpu_custom_call.1} parent=39 // pred_region
          %265 = dma.done [#allocation6], 48
        $region52: #{tpu_custom_call.1} parent=39 // pred_fallthru
          _
        // Predicated region
        $region53: #{tpu_custom_call.1} parent=39 // pred_check
          %p266 = pneg %p108
        $region54: #{tpu_custom_call.1} parent=39 // pred_check_branch
          %268 = sbr.rel (%p266) target = $region56
        $region55: #{tpu_custom_call.1} parent=39 // pred_region
          %270 = dma.done [#allocation9], 1024
        $region56: #{tpu_custom_call.1} parent=39 // pred_fallthru
          _
        %s271 = sand.u32 %s32, 1
        %s272 = scalar_lea.sflag [#allocation3], %s271
        %s273 = sand.u32 %s32, 1
        %s274 = smul.addr %s273, 64
        %s275 = scalar_lea.vmem [#allocation2], %s274
        %p276 = pneg %p45
        %p277 = pneg %p42
        %p278 = pneg %p66
        %p279 = pneg %p63
        %p280 = pneg %p87
        %p281 = pneg %p84
        %p282 = pneg %p108
        %p283 = pneg %p105
        %p284 = pneg %p129
        %p285 = pneg %p126
        %p286 = pneg %p155
        %p287 = pneg %p152
        %s288 = sand.u32 %s142, 1
        %s289 = scalar_lea.sflag [#allocation4], %s288
        %s290 = sand.u32 %s142, 1
        %s291 = smul.addr %s290, 128
        %s292 = scalar_lea.vmem [#allocation10], %s291
        %v293 = vld [vmem:[%s250] sm:$0xf]
        %v294 = vld [vmem:[%s250 + $0x4] sm:$0xf]
        %v295 = vld [vmem:[%s250 + $0x8] sm:$0xf]
        %v296 = vld [vmem:[%s250 + $0xc] sm:$0xf]
        %v297 = vld [vmem:[%s250 + $0x10] sm:$0xf]
        %v298 = vld [vmem:[%s250 + $0x14] sm:$0xf]
        %v299 = vld [vmem:[%s250 + $0x18] sm:$0xf]
        %v300 = vld [vmem:[%s250 + $0x1c] sm:$0xf]
        %v301 = vld [vmem:[%s250 + $0x20] sm:$0xf]
        %v302 = vld [vmem:[%s250 + $0x24] sm:$0xf]
        %v303 = vld [vmem:[%s250 + $0x28] sm:$0xf]
        %v304 = vld [vmem:[%s250 + $0x2c] sm:$0xf]
        %v305 = vld [vmem:[%s250 + $0x30] sm:$0xf]
        %v306 = vld [vmem:[%s250 + $0x34] sm:$0xf]
        %v307 = vld [vmem:[%s250 + $0x38] sm:$0xf]
        %v308 = vld [vmem:[%s250 + $0x3c] sm:$0xf]
        %v309 = vld [vmem:[#allocation5] sm:$0xff]
        %v310 = vld [vmem:[#allocation5 + $0x8] sm:$0xf]
        %v311 = vld [vmem:[#allocation5 + $0xc] sm:$0xff]
        %v312 = vld [vmem:[#allocation5 + $0x14] sm:$0xf]
        %v313 = vld [vmem:[#allocation5 + $0x18] sm:$0xff]
        %v314 = vld [vmem:[#allocation5 + $0x20] sm:$0xf]
        %v315 = vld [vmem:[#allocation5 + $0x24] sm:$0xff]
        %v316 = vld [vmem:[#allocation5 + $0x2c] sm:$0xf]
        %v317 = vld [vmem:[#allocation5 + $0x30] sm:$0xff]
        %v318 = vld [vmem:[#allocation5 + $0x38] sm:$0xf]
        %v319 = vld [vmem:[#allocation5 + $0x3c] sm:$0xff]
        %v320 = vld [vmem:[#allocation5 + $0x44] sm:$0xf]
        %v321 = vld [vmem:[#allocation5 + $0x48] sm:$0xff]
        %v322 = vld [vmem:[#allocation5 + $0x50] sm:$0xf]
        %v323 = vld [vmem:[#allocation5 + $0x54] sm:$0xff]
        %v324 = vld [vmem:[#allocation5 + $0x5c] sm:$0xf]
        %v325 = vld [vmem:[#allocation5 + $0x60] sm:$0xff]
        %v326 = vld [vmem:[#allocation5 + $0x68] sm:$0xf]
        %v327 = vld [vmem:[#allocation5 + $0x6c] sm:$0xff]
        %v328 = vld [vmem:[#allocation5 + $0x74] sm:$0xf]
        %v329 = vld [vmem:[#allocation5 + $0x78] sm:$0xff]
        %v330 = vld [vmem:[#allocation5 + $0x80] sm:$0xf]
        %v331 = vld [vmem:[#allocation5 + $0x84] sm:$0xff]
        %v332 = vld [vmem:[#allocation5 + $0x8c] sm:$0xf]
        %v333 = vld [vmem:[#allocation5 + $0x90] sm:$0xff]
        %v334 = vld [vmem:[#allocation5 + $0x98] sm:$0xf]
        %v335 = vld [vmem:[#allocation5 + $0x9c] sm:$0xff]
        %v336 = vld [vmem:[#allocation5 + $0xa4] sm:$0xf]
        %v337 = vld [vmem:[#allocation5 + $0xa8] sm:$0xff]
        %v338 = vld [vmem:[#allocation5 + $0xb0] sm:$0xf]
        %v339 = vld [vmem:[#allocation5 + $0xb4] sm:$0xff]
        %v340 = vld [vmem:[#allocation5 + $0xbc] sm:$0xf]
        %v341 = vld [vmem:[#allocation7] sm:$0x7]
        %v343 = vperm.slane %v341, 0
        %v344 = vperm.slane %v341, 1
        %v345 = vperm.slane %v341, 2
        %v365 = vunpack.c.l.b16 %v293
        %v366 = vunpack.c.l.b16 %v294
        %v367 = vunpack.c.l.b16 %v295
        %v368 = vunpack.c.l.b16 %v296
        %v369 = vunpack.c.l.b16 %v297
        %v370 = vunpack.c.l.b16 %v298
        %v371 = vunpack.c.l.b16 %v299
        %v372 = vunpack.c.l.b16 %v300
        %v373 = vunpack.c.l.b16 %v301
        %v374 = vunpack.c.l.b16 %v302
        %v375 = vunpack.c.l.b16 %v303
        %v376 = vunpack.c.l.b16 %v304
        %v377 = vunpack.c.l.b16 %v305
        %v378 = vunpack.c.l.b16 %v306
        %v379 = vunpack.c.l.b16 %v307
        %v380 = vunpack.c.l.b16 %v308
        %v381 = vpack.c.b16 %v366, %v365
        %v382 = vpack.c.b16 %v368, %v367
        %v383 = vpack.c.b16 %v370, %v369
        %v384 = vpack.c.b16 %v372, %v371
        %v385 = vpack.c.b16 %v374, %v373
        %v386 = vpack.c.b16 %v376, %v375
        %v387 = vpack.c.b16 %v378, %v377
        %v388 = vpack.c.b16 %v380, %v379
        %v429 = vunpack.c.l.b16 %v309
        %v430 = vunpack.c.h.b16 %v309
        %v431 = vunpack.c.l.b16 %v310
        %v432 = vunpack.c.l.b16 %v311
        %v433 = vunpack.c.h.b16 %v311
        %v434 = vunpack.c.l.b16 %v312
        %v435 = vunpack.c.l.b16 %v313
        %v436 = vunpack.c.h.b16 %v313
        %v437 = vunpack.c.l.b16 %v314
        %v438 = vunpack.c.l.b16 %v315
        %v439 = vunpack.c.h.b16 %v315
        %v440 = vunpack.c.l.b16 %v316
        %v441 = vunpack.c.l.b16 %v317
        %v442 = vunpack.c.h.b16 %v317
        %v443 = vunpack.c.l.b16 %v318
        %v444 = vunpack.c.l.b16 %v319
        %v445 = vunpack.c.h.b16 %v319
        %v446 = vunpack.c.l.b16 %v320
        %v447 = vunpack.c.l.b16 %v321
        %v448 = vunpack.c.h.b16 %v321
        %v449 = vunpack.c.l.b16 %v322
        %v450 = vunpack.c.l.b16 %v323
        %v451 = vunpack.c.h.b16 %v323
        %v452 = vunpack.c.l.b16 %v324
        %v453 = vunpack.c.l.b16 %v325
        %v454 = vunpack.c.h.b16 %v325
        %v455 = vunpack.c.l.b16 %v326
        %v456 = vunpack.c.l.b16 %v327
        %v457 = vunpack.c.h.b16 %v327
        %v458 = vunpack.c.l.b16 %v328
        %v459 = vunpack.c.l.b16 %v329
        %v460 = vunpack.c.h.b16 %v329
        %v461 = vunpack.c.l.b16 %v330
        %v462 = vunpack.c.l.b16 %v331
        %v463 = vunpack.c.h.b16 %v331
        %v464 = vunpack.c.l.b16 %v332
        %v465 = vunpack.c.l.b16 %v333
        %v466 = vunpack.c.h.b16 %v333
        %v467 = vunpack.c.l.b16 %v334
        %v468 = vunpack.c.l.b16 %v335
        %v469 = vunpack.c.h.b16 %v335
        %v470 = vunpack.c.l.b16 %v336
        %v471 = vunpack.c.l.b16 %v337
        %v472 = vunpack.c.h.b16 %v337
        %v473 = vunpack.c.l.b16 %v338
        %v474 = vunpack.c.l.b16 %v339
        %v475 = vunpack.c.h.b16 %v339
        %v476 = vunpack.c.l.b16 %v340
        %v477 = vpack.c.b16 %v432, %v429
        %v478 = vpack.c.b16 %v433, %v430
        %v479 = vpack.c.b16 %v434, %v431
        %v480 = vpack.c.b16 %v438, %v435
        %v481 = vpack.c.b16 %v439, %v436
        %v482 = vpack.c.b16 %v440, %v437
        %v483 = vpack.c.b16 %v444, %v441
        %v484 = vpack.c.b16 %v445, %v442
        %v485 = vpack.c.b16 %v446, %v443
        %v486 = vpack.c.b16 %v450, %v447
        %v487 = vpack.c.b16 %v451, %v448
        %v488 = vpack.c.b16 %v452, %v449
        %v489 = vpack.c.b16 %v456, %v453
        %v490 = vpack.c.b16 %v457, %v454
        %v491 = vpack.c.b16 %v458, %v455
        %v492 = vpack.c.b16 %v462, %v459
        %v493 = vpack.c.b16 %v463, %v460
        %v494 = vpack.c.b16 %v464, %v461
        %v495 = vpack.c.b16 %v468, %v465
        %v496 = vpack.c.b16 %v469, %v466
        %v497 = vpack.c.b16 %v470, %v467
        %v498 = vpack.c.b16 %v474, %v471
        %v499 = vpack.c.b16 %v475, %v472
        %v500 = vpack.c.b16 %v476, %v473
        %525 = vmatpush.bf16.msra.mxu0 %v498
        %526 = vmatpush.bf16.msra.mxu0 %v495
        %527 = vmatpush.bf16.msra.mxu0 %v492
        %528 = vmatpush.bf16.msra.mxu0 %v489
        %529 = vmatpush.bf16.msra.mxu0 %v486
        %530 = vmatpush.bf16.msra.mxu0 %v483
        %531 = vmatpush.bf16.msra.mxu0 %v480
        %532 = vmatpush.bf16.msra.mxu0 %v477
        %533 = vmatmul.bf16.gmra.mxu0 %v381
        %v534 = vpop.f32.mrf.mxu0
        %v535 = vadd.f32 %v343, %v534
        %v536 = vpop.f32.mrf.mxu0
        %v537 = vadd.f32 %v343, %v536
        %538 = vmatmul.bf16.gmra.mxu0 %v382
        %v539 = vpop.f32.mrf.mxu0
        %v540 = vadd.f32 %v343, %v539
        %v541 = vpop.f32.mrf.mxu0
        %v542 = vadd.f32 %v343, %v541
        %543 = vmatmul.bf16.gmra.mxu0 %v383
        %v544 = vpop.f32.mrf.mxu0
        %v545 = vadd.f32 %v343, %v544
        %v546 = vpop.f32.mrf.mxu0
        %v547 = vadd.f32 %v343, %v546
        %548 = vmatmul.bf16.gmra.mxu0 %v384
        %v549 = vpop.f32.mrf.mxu0
        %v550 = vadd.f32 %v343, %v549
        %v551 = vpop.f32.mrf.mxu0
        %v552 = vadd.f32 %v343, %v551
        %553 = vmatmul.bf16.gmra.mxu0 %v385
        %v554 = vpop.f32.mrf.mxu0
        %v555 = vadd.f32 %v343, %v554
        %v556 = vpop.f32.mrf.mxu0
        %v557 = vadd.f32 %v343, %v556
        %558 = vmatmul.bf16.gmra.mxu0 %v386
        %v559 = vpop.f32.mrf.mxu0
        %v560 = vadd.f32 %v343, %v559
        %v561 = vpop.f32.mrf.mxu0
        %v562 = vadd.f32 %v343, %v561
        %563 = vmatmul.bf16.gmra.mxu0 %v387
        %v564 = vpop.f32.mrf.mxu0
        %v565 = vadd.f32 %v343, %v564
        %v566 = vpop.f32.mrf.mxu0
        %v567 = vadd.f32 %v343, %v566
        %568 = vmatmul.bf16.gmra.mxu0 %v388
        %v569 = vpop.f32.mrf.mxu0
        %v570 = vadd.f32 %v343, %v569
        %v571 = vpop.f32.mrf.mxu0
        %v572 = vadd.f32 %v343, %v571
        %573 = vdwg.mxu0
        %574 = vmatpush.bf16.msra.mxu0 %v499
        %575 = vmatpush.bf16.msra.mxu0 %v496
        %576 = vmatpush.bf16.msra.mxu0 %v493
        %577 = vmatpush.bf16.msra.mxu0 %v490
        %578 = vmatpush.bf16.msra.mxu0 %v487
        %579 = vmatpush.bf16.msra.mxu0 %v484
        %580 = vmatpush.bf16.msra.mxu0 %v481
        %581 = vmatpush.bf16.msra.mxu0 %v478
        %582 = vmatmul.bf16.gmra.mxu0 %v381
        %v583 = vpop.f32.mrf.mxu0
        %v584 = vadd.f32 %v344, %v583
        %v585 = vpop.f32.mrf.mxu0
        %v586 = vadd.f32 %v344, %v585
        %587 = vmatmul.bf16.gmra.mxu0 %v382
        %v588 = vpop.f32.mrf.mxu0
        %v589 = vadd.f32 %v344, %v588
        %v590 = vpop.f32.mrf.mxu0
        %v591 = vadd.f32 %v344, %v590
        %592 = vmatmul.bf16.gmra.mxu0 %v383
        %v593 = vpop.f32.mrf.mxu0
        %v594 = vadd.f32 %v344, %v593
        %v595 = vpop.f32.mrf.mxu0
        %v596 = vadd.f32 %v344, %v595
        %597 = vmatmul.bf16.gmra.mxu0 %v384
        %v598 = vpop.f32.mrf.mxu0
        %v599 = vadd.f32 %v344, %v598
        %v600 = vpop.f32.mrf.mxu0
        %v601 = vadd.f32 %v344, %v600
        %602 = vmatmul.bf16.gmra.mxu0 %v385
        %v603 = vpop.f32.mrf.mxu0
        %v604 = vadd.f32 %v344, %v603
        %v605 = vpop.f32.mrf.mxu0
        %v606 = vadd.f32 %v344, %v605
        %607 = vmatmul.bf16.gmra.mxu0 %v386
        %v608 = vpop.f32.mrf.mxu0
        %v609 = vadd.f32 %v344, %v608
        %v610 = vpop.f32.mrf.mxu0
        %v611 = vadd.f32 %v344, %v610
        %612 = vmatmul.bf16.gmra.mxu0 %v387
        %v613 = vpop.f32.mrf.mxu0
        %v614 = vadd.f32 %v344, %v613
        %v615 = vpop.f32.mrf.mxu0
        %v616 = vadd.f32 %v344, %v615
        %617 = vmatmul.bf16.gmra.mxu0 %v388
        %v618 = vpop.f32.mrf.mxu0
        %v619 = vadd.f32 %v344, %v618
        %v620 = vpop.f32.mrf.mxu0
        %v621 = vadd.f32 %v344, %v620
        %622 = vdwg.mxu0
        %623 = vmatpush.bf16.msra.mxu0 %v500
        %624 = vmatpush.bf16.msra.mxu0 %v497
        %625 = vmatpush.bf16.msra.mxu0 %v494
        %626 = vmatpush.bf16.msra.mxu0 %v491
        %627 = vmatpush.bf16.msra.mxu0 %v488
        %628 = vmatpush.bf16.msra.mxu0 %v485
        %629 = vmatpush.bf16.msra.mxu0 %v482
        %630 = vmatpush.bf16.msra.mxu0 %v479
        %631 = vmatmul.bf16.gmra.mxu0 %v381
        %v632 = vpop.f32.mrf.mxu0
        %v633 = vadd.f32 %v345, %v632
        %v634 = vpop.f32.mrf.mxu0
        %v635 = vadd.f32 %v345, %v634
        %636 = vmatmul.bf16.gmra.mxu0 %v382
        %v637 = vpop.f32.mrf.mxu0
        %v638 = vadd.f32 %v345, %v637
        %v639 = vpop.f32.mrf.mxu0
        %v640 = vadd.f32 %v345, %v639
        %641 = vmatmul.bf16.gmra.mxu0 %v383
        %v642 = vpop.f32.mrf.mxu0
        %v643 = vadd.f32 %v345, %v642
        %v644 = vpop.f32.mrf.mxu0
        %v645 = vadd.f32 %v345, %v644
        %646 = vmatmul.bf16.gmra.mxu0 %v384
        %v647 = vpop.f32.mrf.mxu0
        %v648 = vadd.f32 %v345, %v647
        %v649 = vpop.f32.mrf.mxu0
        %v650 = vadd.f32 %v345, %v649
        %651 = vmatmul.bf16.gmra.mxu0 %v385
        %v652 = vpop.f32.mrf.mxu0
        %v653 = vadd.f32 %v345, %v652
        %v654 = vpop.f32.mrf.mxu0
        %v655 = vadd.f32 %v345, %v654
        %656 = vmatmul.bf16.gmra.mxu0 %v386
        %v657 = vpop.f32.mrf.mxu0
        %v658 = vadd.f32 %v345, %v657
        %v659 = vpop.f32.mrf.mxu0
        %v660 = vadd.f32 %v345, %v659
        %661 = vmatmul.bf16.gmra.mxu0 %v387
        %v662 = vpop.f32.mrf.mxu0
        %v663 = vadd.f32 %v345, %v662
        %v664 = vpop.f32.mrf.mxu0
        %v665 = vadd.f32 %v345, %v664
        %666 = vmatmul.bf16.gmra.mxu0 %v388
        %v667 = vpop.f32.mrf.mxu0
        %v668 = vadd.f32 %v345, %v667
        %v669 = vpop.f32.mrf.mxu0
        %v670 = vadd.f32 %v345, %v669
        %671 = vdwg.mxu0
        %v672 = vmul.f32 %v535, 0.17677669
        %v673 = vmul.f32 %v537, 0.17677669
        %v674 = vmul.f32 %v540, 0.17677669
        %v675 = vmul.f32 %v542, 0.17677669
        %v676 = vmul.f32 %v545, 0.17677669
        %v677 = vmul.f32 %v547, 0.17677669
        %v678 = vmul.f32 %v550, 0.17677669
        %v679 = vmul.f32 %v552, 0.17677669
        %v680 = vmul.f32 %v555, 0.17677669
        %v681 = vmul.f32 %v557, 0.17677669
        %v682 = vmul.f32 %v560, 0.17677669
        %v683 = vmul.f32 %v562, 0.17677669
        %v684 = vmul.f32 %v565, 0.17677669
        %v685 = vmul.f32 %v567, 0.17677669
        %v686 = vmul.f32 %v570, 0.17677669
        %v687 = vmul.f32 %v572, 0.17677669
        %v688 = vpack.c.bf16 %v672, %v672
        %v689 = vpack.c.bf16 %v673, %v673
        %v690 = vpack.c.bf16 %v674, %v674
        %v691 = vpack.c.bf16 %v675, %v675
        %v692 = vpack.c.bf16 %v676, %v676
        %v693 = vpack.c.bf16 %v677, %v677
        %v694 = vpack.c.bf16 %v678, %v678
        %v695 = vpack.c.bf16 %v679, %v679
        %v696 = vpack.c.bf16 %v680, %v680
        %v697 = vpack.c.bf16 %v681, %v681
        %v698 = vpack.c.bf16 %v682, %v682
        %v699 = vpack.c.bf16 %v683, %v683
        %v700 = vpack.c.bf16 %v684, %v684
        %v701 = vpack.c.bf16 %v685, %v685
        %v702 = vpack.c.bf16 %v686, %v686
        %v703 = vpack.c.bf16 %v687, %v687
        %v704 = vpack.c.bf16 %v584, %v584
        %v705 = vpack.c.bf16 %v586, %v586
        %v706 = vpack.c.bf16 %v589, %v589
        %v707 = vpack.c.bf16 %v591, %v591
        %v708 = vpack.c.bf16 %v594, %v594
        %v709 = vpack.c.bf16 %v596, %v596
        %v710 = vpack.c.bf16 %v599, %v599
        %v711 = vpack.c.bf16 %v601, %v601
        %v712 = vpack.c.bf16 %v604, %v604
        %v713 = vpack.c.bf16 %v606, %v606
        %v714 = vpack.c.bf16 %v609, %v609
        %v715 = vpack.c.bf16 %v611, %v611
        %v716 = vpack.c.bf16 %v614, %v614
        %v717 = vpack.c.bf16 %v616, %v616
        %v718 = vpack.c.bf16 %v619, %v619
        %v719 = vpack.c.bf16 %v621, %v621
        %v720 = vpack.c.bf16 %v633, %v633
        %v721 = vpack.c.bf16 %v635, %v635
        %v722 = vpack.c.bf16 %v638, %v638
        %v723 = vpack.c.bf16 %v640, %v640
        %v724 = vpack.c.bf16 %v643, %v643
        %v725 = vpack.c.bf16 %v645, %v645
        %v726 = vpack.c.bf16 %v648, %v648
        %v727 = vpack.c.bf16 %v650, %v650
        %v728 = vpack.c.bf16 %v653, %v653
        %v729 = vpack.c.bf16 %v655, %v655
        %v730 = vpack.c.bf16 %v658, %v658
        %v731 = vpack.c.bf16 %v660, %v660
        %v732 = vpack.c.bf16 %v663, %v663
        %v733 = vpack.c.bf16 %v665, %v665
        %v734 = vpack.c.bf16 %v668, %v668
        %v735 = vpack.c.bf16 %v670, %v670
        %752 = vrot.lane.b32.xlu0 %v688, 96
        %v753 = vpop.permute.xlu0 %752
        %754 = vrot.lane.b32.xlu0 %v689, 96
        %v755 = vpop.permute.xlu0 %754
        %756 = vrot.lane.b32.xlu0 %v690, 96
        %v757 = vpop.permute.xlu0 %756
        %758 = vrot.lane.b32.xlu0 %v691, 96
        %v759 = vpop.permute.xlu0 %758
        %760 = vrot.lane.b32.xlu0 %v692, 96
        %v761 = vpop.permute.xlu0 %760
        %762 = vrot.lane.b32.xlu0 %v693, 96
        %v763 = vpop.permute.xlu0 %762
        %764 = vrot.lane.b32.xlu0 %v694, 96
        %v765 = vpop.permute.xlu0 %764
        %766 = vrot.lane.b32.xlu0 %v695, 96
        %v767 = vpop.permute.xlu0 %766
        %768 = vrot.lane.b32.xlu0 %v696, 96
        %v769 = vpop.permute.xlu0 %768
        %770 = vrot.lane.b32.xlu0 %v697, 96
        %v771 = vpop.permute.xlu0 %770
        %772 = vrot.lane.b32.xlu0 %v698, 96
        %v773 = vpop.permute.xlu0 %772
        %774 = vrot.lane.b32.xlu0 %v699, 96
        %v775 = vpop.permute.xlu0 %774
        %776 = vrot.lane.b32.xlu0 %v700, 96
        %v777 = vpop.permute.xlu0 %776
        %778 = vrot.lane.b32.xlu0 %v701, 96
        %v779 = vpop.permute.xlu0 %778
        %780 = vrot.lane.b32.xlu0 %v702, 96
        %v781 = vpop.permute.xlu0 %780
        %782 = vrot.lane.b32.xlu0 %v703, 96
        %v783 = vpop.permute.xlu0 %782
        %784 = vrot.lane.b32.xlu0 %v688, 64
        %v785 = vpop.permute.xlu0 %784
        %786 = vrot.lane.b32.xlu0 %v689, 64
        %v787 = vpop.permute.xlu0 %786
        %788 = vrot.lane.b32.xlu0 %v690, 64
        %v789 = vpop.permute.xlu0 %788
        %790 = vrot.lane.b32.xlu0 %v691, 64
        %v791 = vpop.permute.xlu0 %790
        %792 = vrot.lane.b32.xlu0 %v692, 64
        %v793 = vpop.permute.xlu0 %792
        %794 = vrot.lane.b32.xlu0 %v693, 64
        %v795 = vpop.permute.xlu0 %794
        %796 = vrot.lane.b32.xlu0 %v694, 64
        %v797 = vpop.permute.xlu0 %796
        %798 = vrot.lane.b32.xlu0 %v695, 64
        %v799 = vpop.permute.xlu0 %798
        %800 = vrot.lane.b32.xlu0 %v696, 64
        %v801 = vpop.permute.xlu0 %800
        %802 = vrot.lane.b32.xlu0 %v697, 64
        %v803 = vpop.permute.xlu0 %802
        %804 = vrot.lane.b32.xlu0 %v698, 64
        %v805 = vpop.permute.xlu0 %804
        %806 = vrot.lane.b32.xlu0 %v699, 64
        %v807 = vpop.permute.xlu0 %806
        %808 = vrot.lane.b32.xlu0 %v700, 64
        %v809 = vpop.permute.xlu0 %808
        %810 = vrot.lane.b32.xlu0 %v701, 64
        %v811 = vpop.permute.xlu0 %810
        %812 = vrot.lane.b32.xlu0 %v702, 64
        %v813 = vpop.permute.xlu0 %812
        %814 = vrot.lane.b32.xlu0 %v703, 64
        %v815 = vpop.permute.xlu0 %814
        %816 = vrot.lane.b32.xlu0 %v688, 32
        %v817 = vpop.permute.xlu0 %816
        %818 = vrot.lane.b32.xlu0 %v689, 32
        %v819 = vpop.permute.xlu0 %818
        %820 = vrot.lane.b32.xlu0 %v690, 32
        %v821 = vpop.permute.xlu0 %820
        %822 = vrot.lane.b32.xlu0 %v691, 32
        %v823 = vpop.permute.xlu0 %822
        %824 = vrot.lane.b32.xlu0 %v692, 32
        %v825 = vpop.permute.xlu0 %824
        %826 = vrot.lane.b32.xlu0 %v693, 32
        %v827 = vpop.permute.xlu0 %826
        %828 = vrot.lane.b32.xlu0 %v694, 32
        %v829 = vpop.permute.xlu0 %828
        %830 = vrot.lane.b32.xlu0 %v695, 32
        %v831 = vpop.permute.xlu0 %830
        %832 = vrot.lane.b32.xlu0 %v696, 32
        %v833 = vpop.permute.xlu0 %832
        %834 = vrot.lane.b32.xlu0 %v697, 32
        %v835 = vpop.permute.xlu0 %834
        %836 = vrot.lane.b32.xlu0 %v698, 32
        %v837 = vpop.permute.xlu0 %836
        %838 = vrot.lane.b32.xlu0 %v699, 32
        %v839 = vpop.permute.xlu0 %838
        %840 = vrot.lane.b32.xlu0 %v700, 32
        %v841 = vpop.permute.xlu0 %840
        %842 = vrot.lane.b32.xlu0 %v701, 32
        %v843 = vpop.permute.xlu0 %842
        %844 = vrot.lane.b32.xlu0 %v702, 32
        %v845 = vpop.permute.xlu0 %844
        %846 = vrot.lane.b32.xlu0 %v703, 32
        %v847 = vpop.permute.xlu0 %846
        %864 = vrot.lane.b32.xlu0 %v704, 96
        %v865 = vpop.permute.xlu0 %864
        %866 = vrot.lane.b32.xlu0 %v705, 96
        %v867 = vpop.permute.xlu0 %866
        %868 = vrot.lane.b32.xlu0 %v706, 96
        %v869 = vpop.permute.xlu0 %868
        %870 = vrot.lane.b32.xlu0 %v707, 96
        %v871 = vpop.permute.xlu0 %870
        %872 = vrot.lane.b32.xlu0 %v708, 96
        %v873 = vpop.permute.xlu0 %872
        %874 = vrot.lane.b32.xlu0 %v709, 96
        %v875 = vpop.permute.xlu0 %874
        %876 = vrot.lane.b32.xlu0 %v710, 96
        %v877 = vpop.permute.xlu0 %876
        %878 = vrot.lane.b32.xlu0 %v711, 96
        %v879 = vpop.permute.xlu0 %878
        %880 = vrot.lane.b32.xlu0 %v712, 96
        %v881 = vpop.permute.xlu0 %880
        %882 = vrot.lane.b32.xlu0 %v713, 96
        %v883 = vpop.permute.xlu0 %882
        %884 = vrot.lane.b32.xlu0 %v714, 96
        %v885 = vpop.permute.xlu0 %884
        %886 = vrot.lane.b32.xlu0 %v715, 96
        %v887 = vpop.permute.xlu0 %886
        %888 = vrot.lane.b32.xlu0 %v716, 96
        %v889 = vpop.permute.xlu0 %888
        %890 = vrot.lane.b32.xlu0 %v717, 96
        %v891 = vpop.permute.xlu0 %890
        %892 = vrot.lane.b32.xlu0 %v718, 96
        %v893 = vpop.permute.xlu0 %892
        %894 = vrot.lane.b32.xlu0 %v719, 96
        %v895 = vpop.permute.xlu0 %894
        %896 = vrot.lane.b32.xlu0 %v704, 64
        %v897 = vpop.permute.xlu0 %896
        %898 = vrot.lane.b32.xlu0 %v705, 64
        %v899 = vpop.permute.xlu0 %898
        %900 = vrot.lane.b32.xlu0 %v706, 64
        %v901 = vpop.permute.xlu0 %900
        %902 = vrot.lane.b32.xlu0 %v707, 64
        %v903 = vpop.permute.xlu0 %902
        %904 = vrot.lane.b32.xlu0 %v708, 64
        %v905 = vpop.permute.xlu0 %904
        %906 = vrot.lane.b32.xlu0 %v709, 64
        %v907 = vpop.permute.xlu0 %906
        %908 = vrot.lane.b32.xlu0 %v710, 64
        %v909 = vpop.permute.xlu0 %908
        %910 = vrot.lane.b32.xlu0 %v711, 64
        %v911 = vpop.permute.xlu0 %910
        %912 = vrot.lane.b32.xlu0 %v712, 64
        %v913 = vpop.permute.xlu0 %912
        %914 = vrot.lane.b32.xlu0 %v713, 64
        %v915 = vpop.permute.xlu0 %914
        %916 = vrot.lane.b32.xlu0 %v714, 64
        %v917 = vpop.permute.xlu0 %916
        %918 = vrot.lane.b32.xlu0 %v715, 64
        %v919 = vpop.permute.xlu0 %918
        %920 = vrot.lane.b32.xlu0 %v716, 64
        %v921 = vpop.permute.xlu0 %920
        %922 = vrot.lane.b32.xlu0 %v717, 64
        %v923 = vpop.permute.xlu0 %922
        %924 = vrot.lane.b32.xlu0 %v718, 64
        %v925 = vpop.permute.xlu0 %924
        %926 = vrot.lane.b32.xlu0 %v719, 64
        %v927 = vpop.permute.xlu0 %926
        %928 = vrot.lane.b32.xlu0 %v704, 32
        %v929 = vpop.permute.xlu0 %928
        %930 = vrot.lane.b32.xlu0 %v705, 32
        %v931 = vpop.permute.xlu0 %930
        %932 = vrot.lane.b32.xlu0 %v706, 32
        %v933 = vpop.permute.xlu0 %932
        %934 = vrot.lane.b32.xlu0 %v707, 32
        %v935 = vpop.permute.xlu0 %934
        %936 = vrot.lane.b32.xlu0 %v708, 32
        %v937 = vpop.permute.xlu0 %936
        %938 = vrot.lane.b32.xlu0 %v709, 32
        %v939 = vpop.permute.xlu0 %938
        %940 = vrot.lane.b32.xlu0 %v710, 32
        %v941 = vpop.permute.xlu0 %940
        %942 = vrot.lane.b32.xlu0 %v711, 32
        %v943 = vpop.permute.xlu0 %942
        %944 = vrot.lane.b32.xlu0 %v712, 32
        %v945 = vpop.permute.xlu0 %944
        %946 = vrot.lane.b32.xlu0 %v713, 32
        %v947 = vpop.permute.xlu0 %946
        %948 = vrot.lane.b32.xlu0 %v714, 32
        %v949 = vpop.permute.xlu0 %948
        %950 = vrot.lane.b32.xlu0 %v715, 32
        %v951 = vpop.permute.xlu0 %950
        %952 = vrot.lane.b32.xlu0 %v716, 32
        %v953 = vpop.permute.xlu0 %952
        %954 = vrot.lane.b32.xlu0 %v717, 32
        %v955 = vpop.permute.xlu0 %954
        %956 = vrot.lane.b32.xlu0 %v718, 32
        %v957 = vpop.permute.xlu0 %956
        %958 = vrot.lane.b32.xlu0 %v719, 32
        %v959 = vpop.permute.xlu0 %958
        %976 = vrot.lane.b32.xlu0 %v720, 96
        %v977 = vpop.permute.xlu0 %976
        %978 = vrot.lane.b32.xlu0 %v721, 96
        %v979 = vpop.permute.xlu0 %978
        %980 = vrot.lane.b32.xlu0 %v722, 96
        %v981 = vpop.permute.xlu0 %980
        %982 = vrot.lane.b32.xlu0 %v723, 96
        %v983 = vpop.permute.xlu0 %982
        %984 = vrot.lane.b32.xlu0 %v724, 96
        %v985 = vpop.permute.xlu0 %984
        %986 = vrot.lane.b32.xlu0 %v725, 96
        %v987 = vpop.permute.xlu0 %986
        %988 = vrot.lane.b32.xlu0 %v726, 96
        %v989 = vpop.permute.xlu0 %988
        %990 = vrot.lane.b32.xlu0 %v727, 96
        %v991 = vpop.permute.xlu0 %990
        %992 = vrot.lane.b32.xlu0 %v728, 96
        %v993 = vpop.permute.xlu0 %992
        %994 = vrot.lane.b32.xlu0 %v729, 96
        %v995 = vpop.permute.xlu0 %994
        %996 = vrot.lane.b32.xlu0 %v730, 96
        %v997 = vpop.permute.xlu0 %996
        %998 = vrot.lane.b32.xlu0 %v731, 96
        %v999 = vpop.permute.xlu0 %998
        %1000 = vrot.lane.b32.xlu0 %v732, 96
        %v1001 = vpop.permute.xlu0 %1000
        %1002 = vrot.lane.b32.xlu0 %v733, 96
        %v1003 = vpop.permute.xlu0 %1002
        %1004 = vrot.lane.b32.xlu0 %v734, 96
        %v1005 = vpop.permute.xlu0 %1004
        %1006 = vrot.lane.b32.xlu0 %v735, 96
        %v1007 = vpop.permute.xlu0 %1006
        %1008 = vrot.lane.b32.xlu0 %v720, 64
        %v1009 = vpop.permute.xlu0 %1008
        %1010 = vrot.lane.b32.xlu0 %v721, 64
        %v1011 = vpop.permute.xlu0 %1010
        %1012 = vrot.lane.b32.xlu0 %v722, 64
        %v1013 = vpop.permute.xlu0 %1012
        %1014 = vrot.lane.b32.xlu0 %v723, 64
        %v1015 = vpop.permute.xlu0 %1014
        %1016 = vrot.lane.b32.xlu0 %v724, 64
        %v1017 = vpop.permute.xlu0 %1016
        %1018 = vrot.lane.b32.xlu0 %v725, 64
        %v1019 = vpop.permute.xlu0 %1018
        %1020 = vrot.lane.b32.xlu0 %v726, 64
        %v1021 = vpop.permute.xlu0 %1020
        %1022 = vrot.lane.b32.xlu0 %v727, 64
        %v1023 = vpop.permute.xlu0 %1022
        %1024 = vrot.lane.b32.xlu0 %v728, 64
        %v1025 = vpop.permute.xlu0 %1024
        %1026 = vrot.lane.b32.xlu0 %v729, 64
        %v1027 = vpop.permute.xlu0 %1026
        %1028 = vrot.lane.b32.xlu0 %v730, 64
        %v1029 = vpop.permute.xlu0 %1028
        %1030 = vrot.lane.b32.xlu0 %v731, 64
        %v1031 = vpop.permute.xlu0 %1030
        %1032 = vrot.lane.b32.xlu0 %v732, 64
        %v1033 = vpop.permute.xlu0 %1032
        %1034 = vrot.lane.b32.xlu0 %v733, 64
        %v1035 = vpop.permute.xlu0 %1034
        %1036 = vrot.lane.b32.xlu0 %v734, 64
        %v1037 = vpop.permute.xlu0 %1036
        %1038 = vrot.lane.b32.xlu0 %v735, 64
        %v1039 = vpop.permute.xlu0 %1038
        %1040 = vrot.lane.b32.xlu0 %v720, 32
        %v1041 = vpop.permute.xlu0 %1040
        %1042 = vrot.lane.b32.xlu0 %v721, 32
        %v1043 = vpop.permute.xlu0 %1042
        %1044 = vrot.lane.b32.xlu0 %v722, 32
        %v1045 = vpop.permute.xlu0 %1044
        %1046 = vrot.lane.b32.xlu0 %v723, 32
        %v1047 = vpop.permute.xlu0 %1046
        %1048 = vrot.lane.b32.xlu0 %v724, 32
        %v1049 = vpop.permute.xlu0 %1048
        %1050 = vrot.lane.b32.xlu0 %v725, 32
        %v1051 = vpop.permute.xlu0 %1050
        %1052 = vrot.lane.b32.xlu0 %v726, 32
        %v1053 = vpop.permute.xlu0 %1052
        %1054 = vrot.lane.b32.xlu0 %v727, 32
        %v1055 = vpop.permute.xlu0 %1054
        %1056 = vrot.lane.b32.xlu0 %v728, 32
        %v1057 = vpop.permute.xlu0 %1056
        %1058 = vrot.lane.b32.xlu0 %v729, 32
        %v1059 = vpop.permute.xlu0 %1058
        %1060 = vrot.lane.b32.xlu0 %v730, 32
        %v1061 = vpop.permute.xlu0 %1060
        %1062 = vrot.lane.b32.xlu0 %v731, 32
        %v1063 = vpop.permute.xlu0 %1062
        %1064 = vrot.lane.b32.xlu0 %v732, 32
        %v1065 = vpop.permute.xlu0 %1064
        %1066 = vrot.lane.b32.xlu0 %v733, 32
        %v1067 = vpop.permute.xlu0 %1066
        %1068 = vrot.lane.b32.xlu0 %v734, 32
        %v1069 = vpop.permute.xlu0 %1068
        %1070 = vrot.lane.b32.xlu0 %v735, 32
        %v1071 = vpop.permute.xlu0 %1070
        %v1072 = vlaneseq
        %v1073 = vshrl.u32 %v1072, 7
        %v1074 = vadd.s32 %v1073, 8
        %v1075 = vadd.s32 %v1073, 16
        %v1076 = vadd.s32 %v1073, 24
        %v1077 = vadd.s32 %v1073, 32
        %v1078 = vadd.s32 %v1073, 40
        %v1079 = vadd.s32 %v1073, 48
        %v1080 = vadd.s32 %v1073, 56
        %v1081 = vadd.s32 %v1073, 64
        %v1082 = vadd.s32 %v1073, 72
        %v1083 = vadd.s32 %v1073, 80
        %v1084 = vadd.s32 %v1073, 88
        %v1085 = vadd.s32 %v1073, 96
        %v1086 = vadd.s32 %v1073, 104
        %v1087 = vadd.s32 %v1073, 112
        %v1088 = vadd.s32 %v1073, 120
        %v1089 = vlaneseq
        %v1090 = vand.u32 %v1089, 127
        %vm1091 = vcmp.le.s32.totalorder %v1090, %v1073
        %vm1092 = vcmp.le.s32.totalorder %v1090, %v1074
        %vm1093 = vcmp.le.s32.totalorder %v1090, %v1075
        %vm1094 = vcmp.le.s32.totalorder %v1090, %v1076
        %vm1095 = vcmp.le.s32.totalorder %v1090, %v1077
        %vm1096 = vcmp.le.s32.totalorder %v1090, %v1078
        %vm1097 = vcmp.le.s32.totalorder %v1090, %v1079
        %vm1098 = vcmp.le.s32.totalorder %v1090, %v1080
        %vm1099 = vcmp.le.s32.totalorder %v1090, %v1081
        %vm1100 = vcmp.le.s32.totalorder %v1090, %v1082
        %vm1101 = vcmp.le.s32.totalorder %v1090, %v1083
        %vm1102 = vcmp.le.s32.totalorder %v1090, %v1084
        %vm1103 = vcmp.le.s32.totalorder %v1090, %v1085
        %vm1104 = vcmp.le.s32.totalorder %v1090, %v1086
        %vm1105 = vcmp.le.s32.totalorder %v1090, %v1087
        %vm1106 = vcmp.le.s32.totalorder %v1090, %v1088
        %v1107 = vsel %vm1091, 0.0, -1e+30
        %v1108 = vsel %vm1092, 0.0, -1e+30
        %v1109 = vsel %vm1093, 0.0, -1e+30
        %v1110 = vsel %vm1094, 0.0, -1e+30
        %v1111 = vsel %vm1095, 0.0, -1e+30
        %v1112 = vsel %vm1096, 0.0, -1e+30
        %v1113 = vsel %vm1097, 0.0, -1e+30
        %v1114 = vsel %vm1098, 0.0, -1e+30
        %v1115 = vsel %vm1099, 0.0, -1e+30
        %v1116 = vsel %vm1100, 0.0, -1e+30
        %v1117 = vsel %vm1101, 0.0, -1e+30
        %v1118 = vsel %vm1102, 0.0, -1e+30
        %v1119 = vsel %vm1103, 0.0, -1e+30
        %v1120 = vsel %vm1104, 0.0, -1e+30
        %v1121 = vsel %vm1105, 0.0, -1e+30
        %v1122 = vsel %vm1106, 0.0, -1e+30
        %v1123 = vunpack.c.l.b16 %v688
        %v1124 = vunpack.c.l.b16 %v689
        %v1125 = vunpack.c.l.b16 %v690
        %v1126 = vunpack.c.l.b16 %v691
        %v1127 = vunpack.c.l.b16 %v692
        %v1128 = vunpack.c.l.b16 %v693
        %v1129 = vunpack.c.l.b16 %v694
        %v1130 = vunpack.c.l.b16 %v695
        %v1131 = vunpack.c.l.b16 %v696
        %v1132 = vunpack.c.l.b16 %v697
        %v1133 = vunpack.c.l.b16 %v698
        %v1134 = vunpack.c.l.b16 %v699
        %v1135 = vunpack.c.l.b16 %v700
        %v1136 = vunpack.c.l.b16 %v701
        %v1137 = vunpack.c.l.b16 %v702
        %v1138 = vunpack.c.l.b16 %v703
        %v1139 = vpack.c.b16 %v1124, %v1123
        %v1140 = vpack.c.b16 %v1126, %v1125
        %v1141 = vpack.c.b16 %v1128, %v1127
        %v1142 = vpack.c.b16 %v1130, %v1129
        %v1143 = vpack.c.b16 %v1132, %v1131
        %v1144 = vpack.c.b16 %v1134, %v1133
        %v1145 = vpack.c.b16 %v1136, %v1135
        %v1146 = vpack.c.b16 %v1138, %v1137
        %v1147 = vunpack.c.l.b16 %v704
        %v1148 = vunpack.c.l.b16 %v705
        %v1149 = vunpack.c.l.b16 %v706
        %v1150 = vunpack.c.l.b16 %v707
        %v1151 = vunpack.c.l.b16 %v708
        %v1152 = vunpack.c.l.b16 %v709
        %v1153 = vunpack.c.l.b16 %v710
        %v1154 = vunpack.c.l.b16 %v711
        %v1155 = vunpack.c.l.b16 %v712
        %v1156 = vunpack.c.l.b16 %v713
        %v1157 = vunpack.c.l.b16 %v714
        %v1158 = vunpack.c.l.b16 %v715
        %v1159 = vunpack.c.l.b16 %v716
        %v1160 = vunpack.c.l.b16 %v717
        %v1161 = vunpack.c.l.b16 %v718
        %v1162 = vunpack.c.l.b16 %v719
        %v1163 = vpack.c.b16 %v1148, %v1147
        %v1164 = vpack.c.b16 %v1150, %v1149
        %v1165 = vpack.c.b16 %v1152, %v1151
        %v1166 = vpack.c.b16 %v1154, %v1153
        %v1167 = vpack.c.b16 %v1156, %v1155
        %v1168 = vpack.c.b16 %v1158, %v1157
        %v1169 = vpack.c.b16 %v1160, %v1159
        %v1170 = vpack.c.b16 %v1162, %v1161
        %vm1171 = vcmask 261120
        %v1173 = vsel %vm1171, %v1139, 0
        %v1176 = vsel %vm1171, %v1140, 0
        %v1179 = vsel %vm1171, %v1141, 0
        %v1182 = vsel %vm1171, %v1142, 0
        %v1185 = vsel %vm1171, %v1143, 0
        %v1188 = vsel %vm1171, %v1144, 0
        %v1191 = vsel %vm1171, %v1145, 0
        %v1194 = vsel %vm1171, %v1146, 0
        %v1197 = vsel %vm1171, %v1163, 0
        %v1200 = vsel %vm1171, %v1164, 0
        %v1203 = vsel %vm1171, %v1165, 0
        %v1206 = vsel %vm1171, %v1166, 0
        %v1209 = vsel %vm1171, %v1167, 0
        %v1212 = vsel %vm1171, %v1168, 0
        %v1215 = vsel %vm1171, %v1169, 0
        %v1218 = vsel %vm1171, %v1170, 0
        %1220 = vmatpush.bf16.xpose.msra.mxu0 %v1218
        %1221 = vmatpush.bf16.xpose.msra.mxu0 %v1215
        %1222 = vmatpush.bf16.xpose.msra.mxu0 %v1212
        %1223 = vmatpush.bf16.xpose.msra.mxu0 %v1209
        %1224 = vmatpush.bf16.xpose.msra.mxu0 %v1206
        %1225 = vmatpush.bf16.xpose.msra.mxu0 %v1203
        %1226 = vmatpush.bf16.xpose.msra.mxu0 %v1200
        %1227 = vmatpush.bf16.xpose.msra.mxu0 %v1197
        %1228 = vmatmul.bf16.gmra.mxu0 %v1173
        %v1229 = vpop.f32.mrf.mxu0
        %v1230 = vadd.f32 %v1107, %v1229
        %v1231 = vpop.f32.mrf.mxu0
        %v1232 = vadd.f32 %v1108, %v1231
        %1233 = vmatmul.bf16.gmra.mxu0 %v1176
        %v1234 = vpop.f32.mrf.mxu0
        %v1235 = vadd.f32 %v1109, %v1234
        %v1236 = vpop.f32.mrf.mxu0
        %v1237 = vadd.f32 %v1110, %v1236
        %1238 = vmatmul.bf16.gmra.mxu0 %v1179
        %v1239 = vpop.f32.mrf.mxu0
        %v1240 = vadd.f32 %v1111, %v1239
        %v1241 = vpop.f32.mrf.mxu0
        %v1242 = vadd.f32 %v1112, %v1241
        %1243 = vmatmul.bf16.gmra.mxu0 %v1182
        %v1244 = vpop.f32.mrf.mxu0
        %v1245 = vadd.f32 %v1113, %v1244
        %v1246 = vpop.f32.mrf.mxu0
        %v1247 = vadd.f32 %v1114, %v1246
        %1248 = vmatmul.bf16.gmra.mxu0 %v1185
        %v1249 = vpop.f32.mrf.mxu0
        %v1250 = vadd.f32 %v1115, %v1249
        %v1251 = vpop.f32.mrf.mxu0
        %v1252 = vadd.f32 %v1116, %v1251
        %1253 = vmatmul.bf16.gmra.mxu0 %v1188
        %v1254 = vpop.f32.mrf.mxu0
        %v1255 = vadd.f32 %v1117, %v1254
        %v1256 = vpop.f32.mrf.mxu0
        %v1257 = vadd.f32 %v1118, %v1256
        %1258 = vmatmul.bf16.gmra.mxu0 %v1191
        %v1259 = vpop.f32.mrf.mxu0
        %v1260 = vadd.f32 %v1119, %v1259
        %v1261 = vpop.f32.mrf.mxu0
        %v1262 = vadd.f32 %v1120, %v1261
        %1263 = vmatmul.bf16.gmra.mxu0 %v1194
        %v1264 = vpop.f32.mrf.mxu0
        %v1265 = vadd.f32 %v1121, %v1264
        %v1266 = vpop.f32.mrf.mxu0
        %v1267 = vadd.f32 %v1122, %v1266
        %1268 = vdwg.mxu0
        %v1269 = vunpack.c.l.b16 %v753
        %v1270 = vunpack.c.l.b16 %v755
        %v1271 = vunpack.c.l.b16 %v757
        %v1272 = vunpack.c.l.b16 %v759
        %v1273 = vunpack.c.l.b16 %v761
        %v1274 = vunpack.c.l.b16 %v763
        %v1275 = vunpack.c.l.b16 %v765
        %v1276 = vunpack.c.l.b16 %v767
        %v1277 = vunpack.c.l.b16 %v769
        %v1278 = vunpack.c.l.b16 %v771
        %v1279 = vunpack.c.l.b16 %v773
        %v1280 = vunpack.c.l.b16 %v775
        %v1281 = vunpack.c.l.b16 %v777
        %v1282 = vunpack.c.l.b16 %v779
        %v1283 = vunpack.c.l.b16 %v781
        %v1284 = vunpack.c.l.b16 %v783
        %v1285 = vpack.c.b16 %v1270, %v1269
        %v1286 = vpack.c.b16 %v1272, %v1271
        %v1287 = vpack.c.b16 %v1274, %v1273
        %v1288 = vpack.c.b16 %v1276, %v1275
        %v1289 = vpack.c.b16 %v1278, %v1277
        %v1290 = vpack.c.b16 %v1280, %v1279
        %v1291 = vpack.c.b16 %v1282, %v1281
        %v1292 = vpack.c.b16 %v1284, %v1283
        %v1293 = vunpack.c.l.b16 %v865
        %v1294 = vunpack.c.l.b16 %v867
        %v1295 = vunpack.c.l.b16 %v869
        %v1296 = vunpack.c.l.b16 %v871
        %v1297 = vunpack.c.l.b16 %v873
        %v1298 = vunpack.c.l.b16 %v875
        %v1299 = vunpack.c.l.b16 %v877
        %v1300 = vunpack.c.l.b16 %v879
        %v1301 = vunpack.c.l.b16 %v881
        %v1302 = vunpack.c.l.b16 %v883
        %v1303 = vunpack.c.l.b16 %v885
        %v1304 = vunpack.c.l.b16 %v887
        %v1305 = vunpack.c.l.b16 %v889
        %v1306 = vunpack.c.l.b16 %v891
        %v1307 = vunpack.c.l.b16 %v893
        %v1308 = vunpack.c.l.b16 %v895
        %v1309 = vpack.c.b16 %v1294, %v1293
        %v1310 = vpack.c.b16 %v1296, %v1295
        %v1311 = vpack.c.b16 %v1298, %v1297
        %v1312 = vpack.c.b16 %v1300, %v1299
        %v1313 = vpack.c.b16 %v1302, %v1301
        %v1314 = vpack.c.b16 %v1304, %v1303
        %v1315 = vpack.c.b16 %v1306, %v1305
        %v1316 = vpack.c.b16 %v1308, %v1307
        %v1318 = vsel %vm1171, %v1285, 0
        %v1321 = vsel %vm1171, %v1286, 0
        %v1324 = vsel %vm1171, %v1287, 0
        %v1327 = vsel %vm1171, %v1288, 0
        %v1330 = vsel %vm1171, %v1289, 0
        %v1333 = vsel %vm1171, %v1290, 0
        %v1336 = vsel %vm1171, %v1291, 0
        %v1339 = vsel %vm1171, %v1292, 0
        %v1342 = vsel %vm1171, %v1309, 0
        %v1345 = vsel %vm1171, %v1310, 0
        %v1348 = vsel %vm1171, %v1311, 0
        %v1351 = vsel %vm1171, %v1312, 0
        %v1354 = vsel %vm1171, %v1313, 0
        %v1357 = vsel %vm1171, %v1314, 0
        %v1360 = vsel %vm1171, %v1315, 0
        %v1363 = vsel %vm1171, %v1316, 0
        %1365 = vmatpush.bf16.xpose.msra.mxu0 %v1363
        %1366 = vmatpush.bf16.xpose.msra.mxu0 %v1360
        %1367 = vmatpush.bf16.xpose.msra.mxu0 %v1357
        %1368 = vmatpush.bf16.xpose.msra.mxu0 %v1354
        %1369 = vmatpush.bf16.xpose.msra.mxu0 %v1351
        %1370 = vmatpush.bf16.xpose.msra.mxu0 %v1348
        %1371 = vmatpush.bf16.xpose.msra.mxu0 %v1345
        %1372 = vmatpush.bf16.xpose.msra.mxu0 %v1342
        %1373 = vmatmul.bf16.gmra.mxu0 %v1318
        %v1374 = vpop.f32.mrf.mxu0
        %v1375 = vadd.f32 %v1107, %v1374
        %v1376 = vpop.f32.mrf.mxu0
        %v1377 = vadd.f32 %v1108, %v1376
        %1378 = vmatmul.bf16.gmra.mxu0 %v1321
        %v1379 = vpop.f32.mrf.mxu0
        %v1380 = vadd.f32 %v1109, %v1379
        %v1381 = vpop.f32.mrf.mxu0
        %v1382 = vadd.f32 %v1110, %v1381
        %1383 = vmatmul.bf16.gmra.mxu0 %v1324
        %v1384 = vpop.f32.mrf.mxu0
        %v1385 = vadd.f32 %v1111, %v1384
        %v1386 = vpop.f32.mrf.mxu0
        %v1387 = vadd.f32 %v1112, %v1386
        %1388 = vmatmul.bf16.gmra.mxu0 %v1327
        %v1389 = vpop.f32.mrf.mxu0
        %v1390 = vadd.f32 %v1113, %v1389
        %v1391 = vpop.f32.mrf.mxu0
        %v1392 = vadd.f32 %v1114, %v1391
        %1393 = vmatmul.bf16.gmra.mxu0 %v1330
        %v1394 = vpop.f32.mrf.mxu0
        %v1395 = vadd.f32 %v1115, %v1394
        %v1396 = vpop.f32.mrf.mxu0
        %v1397 = vadd.f32 %v1116, %v1396
        %1398 = vmatmul.bf16.gmra.mxu0 %v1333
        %v1399 = vpop.f32.mrf.mxu0
        %v1400 = vadd.f32 %v1117, %v1399
        %v1401 = vpop.f32.mrf.mxu0
        %v1402 = vadd.f32 %v1118, %v1401
        %1403 = vmatmul.bf16.gmra.mxu0 %v1336
        %v1404 = vpop.f32.mrf.mxu0
        %v1405 = vadd.f32 %v1119, %v1404
        %v1406 = vpop.f32.mrf.mxu0
        %v1407 = vadd.f32 %v1120, %v1406
        %1408 = vmatmul.bf16.gmra.mxu0 %v1339
        %v1409 = vpop.f32.mrf.mxu0
        %v1410 = vadd.f32 %v1121, %v1409
        %v1411 = vpop.f32.mrf.mxu0
        %v1412 = vadd.f32 %v1122, %v1411
        %1413 = vdwg.mxu0
        %v1414 = vunpack.c.l.b16 %v785
        %v1415 = vunpack.c.l.b16 %v787
        %v1416 = vunpack.c.l.b16 %v789
        %v1417 = vunpack.c.l.b16 %v791
        %v1418 = vunpack.c.l.b16 %v793
        %v1419 = vunpack.c.l.b16 %v795
        %v1420 = vunpack.c.l.b16 %v797
        %v1421 = vunpack.c.l.b16 %v799
        %v1422 = vunpack.c.l.b16 %v801
        %v1423 = vunpack.c.l.b16 %v803
        %v1424 = vunpack.c.l.b16 %v805
        %v1425 = vunpack.c.l.b16 %v807
        %v1426 = vunpack.c.l.b16 %v809
        %v1427 = vunpack.c.l.b16 %v811
        %v1428 = vunpack.c.l.b16 %v813
        %v1429 = vunpack.c.l.b16 %v815
        %v1430 = vpack.c.b16 %v1415, %v1414
        %v1431 = vpack.c.b16 %v1417, %v1416
        %v1432 = vpack.c.b16 %v1419, %v1418
        %v1433 = vpack.c.b16 %v1421, %v1420
        %v1434 = vpack.c.b16 %v1423, %v1422
        %v1435 = vpack.c.b16 %v1425, %v1424
        %v1436 = vpack.c.b16 %v1427, %v1426
        %v1437 = vpack.c.b16 %v1429, %v1428
        %v1438 = vunpack.c.l.b16 %v897
        %v1439 = vunpack.c.l.b16 %v899
        %v1440 = vunpack.c.l.b16 %v901
        %v1441 = vunpack.c.l.b16 %v903
        %v1442 = vunpack.c.l.b16 %v905
        %v1443 = vunpack.c.l.b16 %v907
        %v1444 = vunpack.c.l.b16 %v909
        %v1445 = vunpack.c.l.b16 %v911
        %v1446 = vunpack.c.l.b16 %v913
        %v1447 = vunpack.c.l.b16 %v915
        %v1448 = vunpack.c.l.b16 %v917
        %v1449 = vunpack.c.l.b16 %v919
        %v1450 = vunpack.c.l.b16 %v921
        %v1451 = vunpack.c.l.b16 %v923
        %v1452 = vunpack.c.l.b16 %v925
        %v1453 = vunpack.c.l.b16 %v927
        %v1454 = vpack.c.b16 %v1439, %v1438
        %v1455 = vpack.c.b16 %v1441, %v1440
        %v1456 = vpack.c.b16 %v1443, %v1442
        %v1457 = vpack.c.b16 %v1445, %v1444
        %v1458 = vpack.c.b16 %v1447, %v1446
        %v1459 = vpack.c.b16 %v1449, %v1448
        %v1460 = vpack.c.b16 %v1451, %v1450
        %v1461 = vpack.c.b16 %v1453, %v1452
        %v1463 = vsel %vm1171, %v1430, 0
        %v1466 = vsel %vm1171, %v1431, 0
        %v1469 = vsel %vm1171, %v1432, 0
        %v1472 = vsel %vm1171, %v1433, 0
        %v1475 = vsel %vm1171, %v1434, 0
        %v1478 = vsel %vm1171, %v1435, 0
        %v1481 = vsel %vm1171, %v1436, 0
        %v1484 = vsel %vm1171, %v1437, 0
        %v1487 = vsel %vm1171, %v1454, 0
        %v1490 = vsel %vm1171, %v1455, 0
        %v1493 = vsel %vm1171, %v1456, 0
        %v1496 = vsel %vm1171, %v1457, 0
        %v1499 = vsel %vm1171, %v1458, 0
        %v1502 = vsel %vm1171, %v1459, 0
        %v1505 = vsel %vm1171, %v1460, 0
        %v1508 = vsel %vm1171, %v1461, 0
        %1510 = vmatpush.bf16.xpose.msra.mxu0 %v1508
        %1511 = vmatpush.bf16.xpose.msra.mxu0 %v1505
        %1512 = vmatpush.bf16.xpose.msra.mxu0 %v1502
        %1513 = vmatpush.bf16.xpose.msra.mxu0 %v1499
        %1514 = vmatpush.bf16.xpose.msra.mxu0 %v1496
        %1515 = vmatpush.bf16.xpose.msra.mxu0 %v1493
        %1516 = vmatpush.bf16.xpose.msra.mxu0 %v1490
        %1517 = vmatpush.bf16.xpose.msra.mxu0 %v1487
        %1518 = vmatmul.bf16.gmra.mxu0 %v1463
        %v1519 = vpop.f32.mrf.mxu0
        %v1520 = vadd.f32 %v1107, %v1519
        %v1521 = vpop.f32.mrf.mxu0
        %v1522 = vadd.f32 %v1108, %v1521
        %1523 = vmatmul.bf16.gmra.mxu0 %v1466
        %v1524 = vpop.f32.mrf.mxu0
        %v1525 = vadd.f32 %v1109, %v1524
        %v1526 = vpop.f32.mrf.mxu0
        %v1527 = vadd.f32 %v1110, %v1526
        %1528 = vmatmul.bf16.gmra.mxu0 %v1469
        %v1529 = vpop.f32.mrf.mxu0
        %v1530 = vadd.f32 %v1111, %v1529
        %v1531 = vpop.f32.mrf.mxu0
        %v1532 = vadd.f32 %v1112, %v1531
        %1533 = vmatmul.bf16.gmra.mxu0 %v1472
        %v1534 = vpop.f32.mrf.mxu0
        %v1535 = vadd.f32 %v1113, %v1534
        %v1536 = vpop.f32.mrf.mxu0
        %v1537 = vadd.f32 %v1114, %v1536
        %1538 = vmatmul.bf16.gmra.mxu0 %v1475
        %v1539 = vpop.f32.mrf.mxu0
        %v1540 = vadd.f32 %v1115, %v1539
        %v1541 = vpop.f32.mrf.mxu0
        %v1542 = vadd.f32 %v1116, %v1541
        %1543 = vmatmul.bf16.gmra.mxu0 %v1478
        %v1544 = vpop.f32.mrf.mxu0
        %v1545 = vadd.f32 %v1117, %v1544
        %v1546 = vpop.f32.mrf.mxu0
        %v1547 = vadd.f32 %v1118, %v1546
        %1548 = vmatmul.bf16.gmra.mxu0 %v1481
        %v1549 = vpop.f32.mrf.mxu0
        %v1550 = vadd.f32 %v1119, %v1549
        %v1551 = vpop.f32.mrf.mxu0
        %v1552 = vadd.f32 %v1120, %v1551
        %1553 = vmatmul.bf16.gmra.mxu0 %v1484
        %v1554 = vpop.f32.mrf.mxu0
        %v1555 = vadd.f32 %v1121, %v1554
        %v1556 = vpop.f32.mrf.mxu0
        %v1557 = vadd.f32 %v1122, %v1556
        %1558 = vdwg.mxu0
        %v1559 = vunpack.c.l.b16 %v817
        %v1560 = vunpack.c.l.b16 %v819
        %v1561 = vunpack.c.l.b16 %v821
        %v1562 = vunpack.c.l.b16 %v823
        %v1563 = vunpack.c.l.b16 %v825
        %v1564 = vunpack.c.l.b16 %v827
        %v1565 = vunpack.c.l.b16 %v829
        %v1566 = vunpack.c.l.b16 %v831
        %v1567 = vunpack.c.l.b16 %v833
        %v1568 = vunpack.c.l.b16 %v835
        %v1569 = vunpack.c.l.b16 %v837
        %v1570 = vunpack.c.l.b16 %v839
        %v1571 = vunpack.c.l.b16 %v841
        %v1572 = vunpack.c.l.b16 %v843
        %v1573 = vunpack.c.l.b16 %v845
        %v1574 = vunpack.c.l.b16 %v847
        %v1575 = vpack.c.b16 %v1560, %v1559
        %v1576 = vpack.c.b16 %v1562, %v1561
        %v1577 = vpack.c.b16 %v1564, %v1563
        %v1578 = vpack.c.b16 %v1566, %v1565
        %v1579 = vpack.c.b16 %v1568, %v1567
        %v1580 = vpack.c.b16 %v1570, %v1569
        %v1581 = vpack.c.b16 %v1572, %v1571
        %v1582 = vpack.c.b16 %v1574, %v1573
        %v1583 = vunpack.c.l.b16 %v929
        %v1584 = vunpack.c.l.b16 %v931
        %v1585 = vunpack.c.l.b16 %v933
        %v1586 = vunpack.c.l.b16 %v935
        %v1587 = vunpack.c.l.b16 %v937
        %v1588 = vunpack.c.l.b16 %v939
        %v1589 = vunpack.c.l.b16 %v941
        %v1590 = vunpack.c.l.b16 %v943
        %v1591 = vunpack.c.l.b16 %v945
        %v1592 = vunpack.c.l.b16 %v947
        %v1593 = vunpack.c.l.b16 %v949
        %v1594 = vunpack.c.l.b16 %v951
        %v1595 = vunpack.c.l.b16 %v953
        %v1596 = vunpack.c.l.b16 %v955
        %v1597 = vunpack.c.l.b16 %v957
        %v1598 = vunpack.c.l.b16 %v959
        %v1599 = vpack.c.b16 %v1584, %v1583
        %v1600 = vpack.c.b16 %v1586, %v1585
        %v1601 = vpack.c.b16 %v1588, %v1587
        %v1602 = vpack.c.b16 %v1590, %v1589
        %v1603 = vpack.c.b16 %v1592, %v1591
        %v1604 = vpack.c.b16 %v1594, %v1593
        %v1605 = vpack.c.b16 %v1596, %v1595
        %v1606 = vpack.c.b16 %v1598, %v1597
        %v1608 = vsel %vm1171, %v1575, 0
        %v1611 = vsel %vm1171, %v1576, 0
        %v1614 = vsel %vm1171, %v1577, 0
        %v1617 = vsel %vm1171, %v1578, 0
        %v1620 = vsel %vm1171, %v1579, 0
        %v1623 = vsel %vm1171, %v1580, 0
        %v1626 = vsel %vm1171, %v1581, 0
        %v1629 = vsel %vm1171, %v1582, 0
        %v1632 = vsel %vm1171, %v1599, 0
        %v1635 = vsel %vm1171, %v1600, 0
        %v1638 = vsel %vm1171, %v1601, 0
        %v1641 = vsel %vm1171, %v1602, 0
        %v1644 = vsel %vm1171, %v1603, 0
        %v1647 = vsel %vm1171, %v1604, 0
        %v1650 = vsel %vm1171, %v1605, 0
        %v1653 = vsel %vm1171, %v1606, 0
        %1655 = vmatpush.bf16.xpose.msra.mxu0 %v1653
        %1656 = vmatpush.bf16.xpose.msra.mxu0 %v1650
        %1657 = vmatpush.bf16.xpose.msra.mxu0 %v1647
        %1658 = vmatpush.bf16.xpose.msra.mxu0 %v1644
        %1659 = vmatpush.bf16.xpose.msra.mxu0 %v1641
        %1660 = vmatpush.bf16.xpose.msra.mxu0 %v1638
        %1661 = vmatpush.bf16.xpose.msra.mxu0 %v1635
        %1662 = vmatpush.bf16.xpose.msra.mxu0 %v1632
        %1663 = vmatmul.bf16.gmra.mxu0 %v1608
        %v1664 = vpop.f32.mrf.mxu0
        %v1665 = vadd.f32 %v1107, %v1664
        %v1666 = vpop.f32.mrf.mxu0
        %v1667 = vadd.f32 %v1108, %v1666
        %1668 = vmatmul.bf16.gmra.mxu0 %v1611
        %v1669 = vpop.f32.mrf.mxu0
        %v1670 = vadd.f32 %v1109, %v1669
        %v1671 = vpop.f32.mrf.mxu0
        %v1672 = vadd.f32 %v1110, %v1671
        %1673 = vmatmul.bf16.gmra.mxu0 %v1614
        %v1674 = vpop.f32.mrf.mxu0
        %v1675 = vadd.f32 %v1111, %v1674
        %v1676 = vpop.f32.mrf.mxu0
        %v1677 = vadd.f32 %v1112, %v1676
        %1678 = vmatmul.bf16.gmra.mxu0 %v1617
        %v1679 = vpop.f32.mrf.mxu0
        %v1680 = vadd.f32 %v1113, %v1679
        %v1681 = vpop.f32.mrf.mxu0
        %v1682 = vadd.f32 %v1114, %v1681
        %1683 = vmatmul.bf16.gmra.mxu0 %v1620
        %v1684 = vpop.f32.mrf.mxu0
        %v1685 = vadd.f32 %v1115, %v1684
        %v1686 = vpop.f32.mrf.mxu0
        %v1687 = vadd.f32 %v1116, %v1686
        %1688 = vmatmul.bf16.gmra.mxu0 %v1623
        %v1689 = vpop.f32.mrf.mxu0
        %v1690 = vadd.f32 %v1117, %v1689
        %v1691 = vpop.f32.mrf.mxu0
        %v1692 = vadd.f32 %v1118, %v1691
        %1693 = vmatmul.bf16.gmra.mxu0 %v1626
        %v1694 = vpop.f32.mrf.mxu0
        %v1695 = vadd.f32 %v1119, %v1694
        %v1696 = vpop.f32.mrf.mxu0
        %v1697 = vadd.f32 %v1120, %v1696
        %1698 = vmatmul.bf16.gmra.mxu0 %v1629
        %v1699 = vpop.f32.mrf.mxu0
        %v1700 = vadd.f32 %v1121, %v1699
        %v1701 = vpop.f32.mrf.mxu0
        %v1702 = vadd.f32 %v1122, %v1701
        %1703 = vdwg.mxu0
        %1704 = vmax.xlane.f32.xlu0 %v1230
        %v1705 = vpop.xlane.xlu0 %1704
        %1706 = vmax.xlane.f32.xlu0 %v1232
        %v1707 = vpop.xlane.xlu0 %1706
        %1708 = vmax.xlane.f32.xlu0 %v1235
        %v1709 = vpop.xlane.xlu0 %1708
        %1710 = vmax.xlane.f32.xlu0 %v1237
        %v1711 = vpop.xlane.xlu0 %1710
        %1712 = vmax.xlane.f32.xlu0 %v1240
        %v1713 = vpop.xlane.xlu0 %1712
        %1714 = vmax.xlane.f32.xlu0 %v1242
        %v1715 = vpop.xlane.xlu0 %1714
        %1716 = vmax.xlane.f32.xlu0 %v1245
        %v1717 = vpop.xlane.xlu0 %1716
        %1718 = vmax.xlane.f32.xlu0 %v1247
        %v1719 = vpop.xlane.xlu0 %1718
        %1720 = vmax.xlane.f32.xlu0 %v1250
        %v1721 = vpop.xlane.xlu0 %1720
        %1722 = vmax.xlane.f32.xlu0 %v1252
        %v1723 = vpop.xlane.xlu0 %1722
        %1724 = vmax.xlane.f32.xlu0 %v1255
        %v1725 = vpop.xlane.xlu0 %1724
        %1726 = vmax.xlane.f32.xlu0 %v1257
        %v1727 = vpop.xlane.xlu0 %1726
        %1728 = vmax.xlane.f32.xlu0 %v1260
        %v1729 = vpop.xlane.xlu0 %1728
        %1730 = vmax.xlane.f32.xlu0 %v1262
        %v1731 = vpop.xlane.xlu0 %1730
        %1732 = vmax.xlane.f32.xlu0 %v1265
        %v1733 = vpop.xlane.xlu0 %1732
        %1734 = vmax.xlane.f32.xlu0 %v1267
        %v1735 = vpop.xlane.xlu0 %1734
        %1736 = vmax.xlane.f32.xlu0 %v1375
        %v1737 = vpop.xlane.xlu0 %1736
        %1738 = vmax.xlane.f32.xlu0 %v1377
        %v1739 = vpop.xlane.xlu0 %1738
        %1740 = vmax.xlane.f32.xlu0 %v1380
        %v1741 = vpop.xlane.xlu0 %1740
        %1742 = vmax.xlane.f32.xlu0 %v1382
        %v1743 = vpop.xlane.xlu0 %1742
        %1744 = vmax.xlane.f32.xlu0 %v1385
        %v1745 = vpop.xlane.xlu0 %1744
        %1746 = vmax.xlane.f32.xlu0 %v1387
        %v1747 = vpop.xlane.xlu0 %1746
        %1748 = vmax.xlane.f32.xlu0 %v1390
        %v1749 = vpop.xlane.xlu0 %1748
        %1750 = vmax.xlane.f32.xlu0 %v1392
        %v1751 = vpop.xlane.xlu0 %1750
        %1752 = vmax.xlane.f32.xlu0 %v1395
        %v1753 = vpop.xlane.xlu0 %1752
        %1754 = vmax.xlane.f32.xlu0 %v1397
        %v1755 = vpop.xlane.xlu0 %1754
        %1756 = vmax.xlane.f32.xlu0 %v1400
        %v1757 = vpop.xlane.xlu0 %1756
        %1758 = vmax.xlane.f32.xlu0 %v1402
        %v1759 = vpop.xlane.xlu0 %1758
        %1760 = vmax.xlane.f32.xlu0 %v1405
        %v1761 = vpop.xlane.xlu0 %1760
        %1762 = vmax.xlane.f32.xlu0 %v1407
        %v1763 = vpop.xlane.xlu0 %1762
        %1764 = vmax.xlane.f32.xlu0 %v1410
        %v1765 = vpop.xlane.xlu0 %1764
        %1766 = vmax.xlane.f32.xlu0 %v1412
        %v1767 = vpop.xlane.xlu0 %1766
        %1768 = vmax.xlane.f32.xlu0 %v1520
        %v1769 = vpop.xlane.xlu0 %1768
        %1770 = vmax.xlane.f32.xlu0 %v1522
        %v1771 = vpop.xlane.xlu0 %1770
        %1772 = vmax.xlane.f32.xlu0 %v1525
        %v1773 = vpop.xlane.xlu0 %1772
        %1774 = vmax.xlane.f32.xlu0 %v1527
        %v1775 = vpop.xlane.xlu0 %1774
        %1776 = vmax.xlane.f32.xlu0 %v1530
        %v1777 = vpop.xlane.xlu0 %1776
        %1778 = vmax.xlane.f32.xlu0 %v1532
        %v1779 = vpop.xlane.xlu0 %1778
        %1780 = vmax.xlane.f32.xlu0 %v1535
        %v1781 = vpop.xlane.xlu0 %1780
        %1782 = vmax.xlane.f32.xlu0 %v1537
        %v1783 = vpop.xlane.xlu0 %1782
        %1784 = vmax.xlane.f32.xlu0 %v1540
        %v1785 = vpop.xlane.xlu0 %1784
        %1786 = vmax.xlane.f32.xlu0 %v1542
        %v1787 = vpop.xlane.xlu0 %1786
        %1788 = vmax.xlane.f32.xlu0 %v1545
        %v1789 = vpop.xlane.xlu0 %1788
        %1790 = vmax.xlane.f32.xlu0 %v1547
        %v1791 = vpop.xlane.xlu0 %1790
        %1792 = vmax.xlane.f32.xlu0 %v1550
        %v1793 = vpop.xlane.xlu0 %1792
        %1794 = vmax.xlane.f32.xlu0 %v1552
        %v1795 = vpop.xlane.xlu0 %1794
        %1796 = vmax.xlane.f32.xlu0 %v1555
        %v1797 = vpop.xlane.xlu0 %1796
        %1798 = vmax.xlane.f32.xlu0 %v1557
        %v1799 = vpop.xlane.xlu0 %1798
        %1800 = vmax.xlane.f32.xlu0 %v1665
        %v1801 = vpop.xlane.xlu0 %1800
        %1802 = vmax.xlane.f32.xlu0 %v1667
        %v1803 = vpop.xlane.xlu0 %1802
        %1804 = vmax.xlane.f32.xlu0 %v1670
        %v1805 = vpop.xlane.xlu0 %1804
        %1806 = vmax.xlane.f32.xlu0 %v1672
        %v1807 = vpop.xlane.xlu0 %1806
        %1808 = vmax.xlane.f32.xlu0 %v1675
        %v1809 = vpop.xlane.xlu0 %1808
        %1810 = vmax.xlane.f32.xlu0 %v1677
        %v1811 = vpop.xlane.xlu0 %1810
        %1812 = vmax.xlane.f32.xlu0 %v1680
        %v1813 = vpop.xlane.xlu0 %1812
        %1814 = vmax.xlane.f32.xlu0 %v1682
        %v1815 = vpop.xlane.xlu0 %1814
        %1816 = vmax.xlane.f32.xlu0 %v1685
        %v1817 = vpop.xlane.xlu0 %1816
        %1818 = vmax.xlane.f32.xlu0 %v1687
        %v1819 = vpop.xlane.xlu0 %1818
        %1820 = vmax.xlane.f32.xlu0 %v1690
        %v1821 = vpop.xlane.xlu0 %1820
        %1822 = vmax.xlane.f32.xlu0 %v1692
        %v1823 = vpop.xlane.xlu0 %1822
        %1824 = vmax.xlane.f32.xlu0 %v1695
        %v1825 = vpop.xlane.xlu0 %1824
        %1826 = vmax.xlane.f32.xlu0 %v1697
        %v1827 = vpop.xlane.xlu0 %1826
        %1828 = vmax.xlane.f32.xlu0 %v1700
        %v1829 = vpop.xlane.xlu0 %1828
        %1830 = vmax.xlane.f32.xlu0 %v1702
        %v1831 = vpop.xlane.xlu0 %1830
        %v1832 = vsub.f32 %v1230, %v1705
        %v1833 = vsub.f32 %v1232, %v1707
        %v1834 = vsub.f32 %v1235, %v1709
        %v1835 = vsub.f32 %v1237, %v1711
        %v1836 = vsub.f32 %v1240, %v1713
        %v1837 = vsub.f32 %v1242, %v1715
        %v1838 = vsub.f32 %v1245, %v1717
        %v1839 = vsub.f32 %v1247, %v1719
        %v1840 = vsub.f32 %v1250, %v1721
        %v1841 = vsub.f32 %v1252, %v1723
        %v1842 = vsub.f32 %v1255, %v1725
        %v1843 = vsub.f32 %v1257, %v1727
        %v1844 = vsub.f32 %v1260, %v1729
        %v1845 = vsub.f32 %v1262, %v1731
        %v1846 = vsub.f32 %v1265, %v1733
        %v1847 = vsub.f32 %v1267, %v1735
        %v1848 = vsub.f32 %v1375, %v1737
        %v1849 = vsub.f32 %v1377, %v1739
        %v1850 = vsub.f32 %v1380, %v1741
        %v1851 = vsub.f32 %v1382, %v1743
        %v1852 = vsub.f32 %v1385, %v1745
        %v1853 = vsub.f32 %v1387, %v1747
        %v1854 = vsub.f32 %v1390, %v1749
        %v1855 = vsub.f32 %v1392, %v1751
        %v1856 = vsub.f32 %v1395, %v1753
        %v1857 = vsub.f32 %v1397, %v1755
        %v1858 = vsub.f32 %v1400, %v1757
        %v1859 = vsub.f32 %v1402, %v1759
        %v1860 = vsub.f32 %v1405, %v1761
        %v1861 = vsub.f32 %v1407, %v1763
        %v1862 = vsub.f32 %v1410, %v1765
        %v1863 = vsub.f32 %v1412, %v1767
        %v1864 = vsub.f32 %v1520, %v1769
        %v1865 = vsub.f32 %v1522, %v1771
        %v1866 = vsub.f32 %v1525, %v1773
        %v1867 = vsub.f32 %v1527, %v1775
        %v1868 = vsub.f32 %v1530, %v1777
        %v1869 = vsub.f32 %v1532, %v1779
        %v1870 = vsub.f32 %v1535, %v1781
        %v1871 = vsub.f32 %v1537, %v1783
        %v1872 = vsub.f32 %v1540, %v1785
        %v1873 = vsub.f32 %v1542, %v1787
        %v1874 = vsub.f32 %v1545, %v1789
        %v1875 = vsub.f32 %v1547, %v1791
        %v1876 = vsub.f32 %v1550, %v1793
        %v1877 = vsub.f32 %v1552, %v1795
        %v1878 = vsub.f32 %v1555, %v1797
        %v1879 = vsub.f32 %v1557, %v1799
        %v1880 = vsub.f32 %v1665, %v1801
        %v1881 = vsub.f32 %v1667, %v1803
        %v1882 = vsub.f32 %v1670, %v1805
        %v1883 = vsub.f32 %v1672, %v1807
        %v1884 = vsub.f32 %v1675, %v1809
        %v1885 = vsub.f32 %v1677, %v1811
        %v1886 = vsub.f32 %v1680, %v1813
        %v1887 = vsub.f32 %v1682, %v1815
        %v1888 = vsub.f32 %v1685, %v1817
        %v1889 = vsub.f32 %v1687, %v1819
        %v1890 = vsub.f32 %v1690, %v1821
        %v1891 = vsub.f32 %v1692, %v1823
        %v1892 = vsub.f32 %v1695, %v1825
        %v1893 = vsub.f32 %v1697, %v1827
        %v1894 = vsub.f32 %v1700, %v1829
        %v1895 = vsub.f32 %v1702, %v1831
        %v1896 = vmul.f32 %v1832, 1.442695
        %v1897 = vpow.pop %v1896
        %v1898 = vmul.f32 %v1833, 1.442695
        %v1899 = vpow.pop %v1898
        %v1900 = vmul.f32 %v1834, 1.442695
        %v1901 = vpow.pop %v1900
        %v1902 = vmul.f32 %v1835, 1.442695
        %v1903 = vpow.pop %v1902
        %v1904 = vmul.f32 %v1836, 1.442695
        %v1905 = vpow.pop %v1904
        %v1906 = vmul.f32 %v1837, 1.442695
        %v1907 = vpow.pop %v1906
        %v1908 = vmul.f32 %v1838, 1.442695
        %v1909 = vpow.pop %v1908
        %v1910 = vmul.f32 %v1839, 1.442695
        %v1911 = vpow.pop %v1910
        %v1912 = vmul.f32 %v1840, 1.442695
        %v1913 = vpow.pop %v1912
        %v1914 = vmul.f32 %v1841, 1.442695
        %v1915 = vpow.pop %v1914
        %v1916 = vmul.f32 %v1842, 1.442695
        %v1917 = vpow.pop %v1916
        %v1918 = vmul.f32 %v1843, 1.442695
        %v1919 = vpow.pop %v1918
        %v1920 = vmul.f32 %v1844, 1.442695
        %v1921 = vpow.pop %v1920
        %v1922 = vmul.f32 %v1845, 1.442695
        %v1923 = vpow.pop %v1922
        %v1924 = vmul.f32 %v1846, 1.442695
        %v1925 = vpow.pop %v1924
        %v1926 = vmul.f32 %v1847, 1.442695
        %v1927 = vpow.pop %v1926
        %v1928 = vmul.f32 %v1848, 1.442695
        %v1929 = vpow.pop %v1928
        %v1930 = vmul.f32 %v1849, 1.442695
        %v1931 = vpow.pop %v1930
        %v1932 = vmul.f32 %v1850, 1.442695
        %v1933 = vpow.pop %v1932
        %v1934 = vmul.f32 %v1851, 1.442695
        %v1935 = vpow.pop %v1934
        %v1936 = vmul.f32 %v1852, 1.442695
        %v1937 = vpow.pop %v1936
        %v1938 = vmul.f32 %v1853, 1.442695
        %v1939 = vpow.pop %v1938
        %v1940 = vmul.f32 %v1854, 1.442695
        %v1941 = vpow.pop %v1940
        %v1942 = vmul.f32 %v1855, 1.442695
        %v1943 = vpow.pop %v1942
        %v1944 = vmul.f32 %v1856, 1.442695
        %v1945 = vpow.pop %v1944
        %v1946 = vmul.f32 %v1857, 1.442695
        %v1947 = vpow.pop %v1946
        %v1948 = vmul.f32 %v1858, 1.442695
        %v1949 = vpow.pop %v1948
        %v1950 = vmul.f32 %v1859, 1.442695
        %v1951 = vpow.pop %v1950
        %v1952 = vmul.f32 %v1860, 1.442695
        %v1953 = vpow.pop %v1952
        %v1954 = vmul.f32 %v1861, 1.442695
        %v1955 = vpow.pop %v1954
        %v1956 = vmul.f32 %v1862, 1.442695
        %v1957 = vpow.pop %v1956
        %v1958 = vmul.f32 %v1863, 1.442695
        %v1959 = vpow.pop %v1958
        %v1960 = vmul.f32 %v1864, 1.442695
        %v1961 = vpow.pop %v1960
        %v1962 = vmul.f32 %v1865, 1.442695
        %v1963 = vpow.pop %v1962
        %v1964 = vmul.f32 %v1866, 1.442695
        %v1965 = vpow.pop %v1964
        %v1966 = vmul.f32 %v1867, 1.442695
        %v1967 = vpow.pop %v1966
        %v1968 = vmul.f32 %v1868, 1.442695
        %v1969 = vpow.pop %v1968
        %v1970 = vmul.f32 %v1869, 1.442695
        %v1971 = vpow.pop %v1970
        %v1972 = vmul.f32 %v1870, 1.442695
        %v1973 = vpow.pop %v1972
        %v1974 = vmul.f32 %v1871, 1.442695
        %v1975 = vpow.pop %v1974
        %v1976 = vmul.f32 %v1872, 1.442695
        %v1977 = vpow.pop %v1976
        %v1978 = vmul.f32 %v1873, 1.442695
        %v1979 = vpow.pop %v1978
        %v1980 = vmul.f32 %v1874, 1.442695
        %v1981 = vpow.pop %v1980
        %v1982 = vmul.f32 %v1875, 1.442695
        %v1983 = vpow.pop %v1982
        %v1984 = vmul.f32 %v1876, 1.442695
        %v1985 = vpow.pop %v1984
        %v1986 = vmul.f32 %v1877, 1.442695
        %v1987 = vpow.pop %v1986
        %v1988 = vmul.f32 %v1878, 1.442695
        %v1989 = vpow.pop %v1988
        %v1990 = vmul.f32 %v1879, 1.442695
        %v1991 = vpow.pop %v1990
        %v1992 = vmul.f32 %v1880, 1.442695
        %v1993 = vpow.pop %v1992
        %v1994 = vmul.f32 %v1881, 1.442695
        %v1995 = vpow.pop %v1994
        %v1996 = vmul.f32 %v1882, 1.442695
        %v1997 = vpow.pop %v1996
        %v1998 = vmul.f32 %v1883, 1.442695
        %v1999 = vpow.pop %v1998
        %v2000 = vmul.f32 %v1884, 1.442695
        %v2001 = vpow.pop %v2000
        %v2002 = vmul.f32 %v1885, 1.442695
        %v2003 = vpow.pop %v2002
        %v2004 = vmul.f32 %v1886, 1.442695
        %v2005 = vpow.pop %v2004
        %v2006 = vmul.f32 %v1887, 1.442695
        %v2007 = vpow.pop %v2006
        %v2008 = vmul.f32 %v1888, 1.442695
        %v2009 = vpow.pop %v2008
        %v2010 = vmul.f32 %v1889, 1.442695
        %v2011 = vpow.pop %v2010
        %v2012 = vmul.f32 %v1890, 1.442695
        %v2013 = vpow.pop %v2012
        %v2014 = vmul.f32 %v1891, 1.442695
        %v2015 = vpow.pop %v2014
        %v2016 = vmul.f32 %v1892, 1.442695
        %v2017 = vpow.pop %v2016
        %v2018 = vmul.f32 %v1893, 1.442695
        %v2019 = vpow.pop %v2018
        %v2020 = vmul.f32 %v1894, 1.442695
        %v2021 = vpow.pop %v2020
        %v2022 = vmul.f32 %v1895, 1.442695
        %v2023 = vpow.pop %v2022
        %2024 = vadd.xlane.f32.xlu0 %v1897
        %v2025 = vpop.xlane.xlu0 %2024
        %2026 = vadd.xlane.f32.xlu0 %v1899
        %v2027 = vpop.xlane.xlu0 %2026
        %2028 = vadd.xlane.f32.xlu0 %v1901
        %v2029 = vpop.xlane.xlu0 %2028
        %2030 = vadd.xlane.f32.xlu0 %v1903
        %v2031 = vpop.xlane.xlu0 %2030
        %2032 = vadd.xlane.f32.xlu0 %v1905
        %v2033 = vpop.xlane.xlu0 %2032
        %2034 = vadd.xlane.f32.xlu0 %v1907
        %v2035 = vpop.xlane.xlu0 %2034
        %2036 = vadd.xlane.f32.xlu0 %v1909
        %v2037 = vpop.xlane.xlu0 %2036
        %2038 = vadd.xlane.f32.xlu0 %v1911
        %v2039 = vpop.xlane.xlu0 %2038
        %2040 = vadd.xlane.f32.xlu0 %v1913
        %v2041 = vpop.xlane.xlu0 %2040
        %2042 = vadd.xlane.f32.xlu0 %v1915
        %v2043 = vpop.xlane.xlu0 %2042
        %2044 = vadd.xlane.f32.xlu0 %v1917
        %v2045 = vpop.xlane.xlu0 %2044
        %2046 = vadd.xlane.f32.xlu0 %v1919
        %v2047 = vpop.xlane.xlu0 %2046
        %2048 = vadd.xlane.f32.xlu0 %v1921
        %v2049 = vpop.xlane.xlu0 %2048
        %2050 = vadd.xlane.f32.xlu0 %v1923
        %v2051 = vpop.xlane.xlu0 %2050
        %2052 = vadd.xlane.f32.xlu0 %v1925
        %v2053 = vpop.xlane.xlu0 %2052
        %2054 = vadd.xlane.f32.xlu0 %v1927
        %v2055 = vpop.xlane.xlu0 %2054
        %2056 = vadd.xlane.f32.xlu0 %v1929
        %v2057 = vpop.xlane.xlu0 %2056
        %2058 = vadd.xlane.f32.xlu0 %v1931
        %v2059 = vpop.xlane.xlu0 %2058
        %2060 = vadd.xlane.f32.xlu0 %v1933
        %v2061 = vpop.xlane.xlu0 %2060
        %2062 = vadd.xlane.f32.xlu0 %v1935
        %v2063 = vpop.xlane.xlu0 %2062
        %2064 = vadd.xlane.f32.xlu0 %v1937
        %v2065 = vpop.xlane.xlu0 %2064
        %2066 = vadd.xlane.f32.xlu0 %v1939
        %v2067 = vpop.xlane.xlu0 %2066
        %2068 = vadd.xlane.f32.xlu0 %v1941
        %v2069 = vpop.xlane.xlu0 %2068
        %2070 = vadd.xlane.f32.xlu0 %v1943
        %v2071 = vpop.xlane.xlu0 %2070
        %2072 = vadd.xlane.f32.xlu0 %v1945
        %v2073 = vpop.xlane.xlu0 %2072
        %2074 = vadd.xlane.f32.xlu0 %v1947
        %v2075 = vpop.xlane.xlu0 %2074
        %2076 = vadd.xlane.f32.xlu0 %v1949
        %v2077 = vpop.xlane.xlu0 %2076
        %2078 = vadd.xlane.f32.xlu0 %v1951
        %v2079 = vpop.xlane.xlu0 %2078
        %2080 = vadd.xlane.f32.xlu0 %v1953
        %v2081 = vpop.xlane.xlu0 %2080
        %2082 = vadd.xlane.f32.xlu0 %v1955
        %v2083 = vpop.xlane.xlu0 %2082
        %2084 = vadd.xlane.f32.xlu0 %v1957
        %v2085 = vpop.xlane.xlu0 %2084
        %2086 = vadd.xlane.f32.xlu0 %v1959
        %v2087 = vpop.xlane.xlu0 %2086
        %2088 = vadd.xlane.f32.xlu0 %v1961
        %v2089 = vpop.xlane.xlu0 %2088
        %2090 = vadd.xlane.f32.xlu0 %v1963
        %v2091 = vpop.xlane.xlu0 %2090
        %2092 = vadd.xlane.f32.xlu0 %v1965
        %v2093 = vpop.xlane.xlu0 %2092
        %2094 = vadd.xlane.f32.xlu0 %v1967
        %v2095 = vpop.xlane.xlu0 %2094
        %2096 = vadd.xlane.f32.xlu0 %v1969
        %v2097 = vpop.xlane.xlu0 %2096
        %2098 = vadd.xlane.f32.xlu0 %v1971
        %v2099 = vpop.xlane.xlu0 %2098
        %2100 = vadd.xlane.f32.xlu0 %v1973
        %v2101 = vpop.xlane.xlu0 %2100
        %2102 = vadd.xlane.f32.xlu0 %v1975
        %v2103 = vpop.xlane.xlu0 %2102
        %2104 = vadd.xlane.f32.xlu0 %v1977
        %v2105 = vpop.xlane.xlu0 %2104
        %2106 = vadd.xlane.f32.xlu0 %v1979
        %v2107 = vpop.xlane.xlu0 %2106
        %2108 = vadd.xlane.f32.xlu0 %v1981
        %v2109 = vpop.xlane.xlu0 %2108
        %2110 = vadd.xlane.f32.xlu0 %v1983
        %v2111 = vpop.xlane.xlu0 %2110
        %2112 = vadd.xlane.f32.xlu0 %v1985
        %v2113 = vpop.xlane.xlu0 %2112
        %2114 = vadd.xlane.f32.xlu0 %v1987
        %v2115 = vpop.xlane.xlu0 %2114
        %2116 = vadd.xlane.f32.xlu0 %v1989
        %v2117 = vpop.xlane.xlu0 %2116
        %2118 = vadd.xlane.f32.xlu0 %v1991
        %v2119 = vpop.xlane.xlu0 %2118
        %2120 = vadd.xlane.f32.xlu0 %v1993
        %v2121 = vpop.xlane.xlu0 %2120
        %2122 = vadd.xlane.f32.xlu0 %v1995
        %v2123 = vpop.xlane.xlu0 %2122
        %2124 = vadd.xlane.f32.xlu0 %v1997
        %v2125 = vpop.xlane.xlu0 %2124
        %2126 = vadd.xlane.f32.xlu0 %v1999
        %v2127 = vpop.xlane.xlu0 %2126
        %2128 = vadd.xlane.f32.xlu0 %v2001
        %v2129 = vpop.xlane.xlu0 %2128
        %2130 = vadd.xlane.f32.xlu0 %v2003
        %v2131 = vpop.xlane.xlu0 %2130
        %2132 = vadd.xlane.f32.xlu0 %v2005
        %v2133 = vpop.xlane.xlu0 %2132
        %2134 = vadd.xlane.f32.xlu0 %v2007
        %v2135 = vpop.xlane.xlu0 %2134
        %2136 = vadd.xlane.f32.xlu0 %v2009
        %v2137 = vpop.xlane.xlu0 %2136
        %2138 = vadd.xlane.f32.xlu0 %v2011
        %v2139 = vpop.xlane.xlu0 %2138
        %2140 = vadd.xlane.f32.xlu0 %v2013
        %v2141 = vpop.xlane.xlu0 %2140
        %2142 = vadd.xlane.f32.xlu0 %v2015
        %v2143 = vpop.xlane.xlu0 %2142
        %2144 = vadd.xlane.f32.xlu0 %v2017
        %v2145 = vpop.xlane.xlu0 %2144
        %2146 = vadd.xlane.f32.xlu0 %v2019
        %v2147 = vpop.xlane.xlu0 %2146
        %2148 = vadd.xlane.f32.xlu0 %v2021
        %v2149 = vpop.xlane.xlu0 %2148
        %2150 = vadd.xlane.f32.xlu0 %v2023
        %v2151 = vpop.xlane.xlu0 %2150
        %v2152 = vpack.c.bf16 %v1897, %v1897
        %v2153 = vpack.c.bf16 %v1899, %v1899
        %v2154 = vpack.c.bf16 %v1901, %v1901
        %v2155 = vpack.c.bf16 %v1903, %v1903
        %v2156 = vpack.c.bf16 %v1905, %v1905
        %v2157 = vpack.c.bf16 %v1907, %v1907
        %v2158 = vpack.c.bf16 %v1909, %v1909
        %v2159 = vpack.c.bf16 %v1911, %v1911
        %v2160 = vpack.c.bf16 %v1913, %v1913
        %v2161 = vpack.c.bf16 %v1915, %v1915
        %v2162 = vpack.c.bf16 %v1917, %v1917
        %v2163 = vpack.c.bf16 %v1919, %v1919
        %v2164 = vpack.c.bf16 %v1921, %v1921
        %v2165 = vpack.c.bf16 %v1923, %v1923
        %v2166 = vpack.c.bf16 %v1925, %v1925
        %v2167 = vpack.c.bf16 %v1927, %v1927
        %v2168 = vpack.c.bf16 %v1929, %v1929
        %v2169 = vpack.c.bf16 %v1931, %v1931
        %v2170 = vpack.c.bf16 %v1933, %v1933
        %v2171 = vpack.c.bf16 %v1935, %v1935
        %v2172 = vpack.c.bf16 %v1937, %v1937
        %v2173 = vpack.c.bf16 %v1939, %v1939
        %v2174 = vpack.c.bf16 %v1941, %v1941
        %v2175 = vpack.c.bf16 %v1943, %v1943
        %v2176 = vpack.c.bf16 %v1945, %v1945
        %v2177 = vpack.c.bf16 %v1947, %v1947
        %v2178 = vpack.c.bf16 %v1949, %v1949
        %v2179 = vpack.c.bf16 %v1951, %v1951
        %v2180 = vpack.c.bf16 %v1953, %v1953
        %v2181 = vpack.c.bf16 %v1955, %v1955
        %v2182 = vpack.c.bf16 %v1957, %v1957
        %v2183 = vpack.c.bf16 %v1959, %v1959
        %v2184 = vpack.c.bf16 %v1961, %v1961
        %v2185 = vpack.c.bf16 %v1963, %v1963
        %v2186 = vpack.c.bf16 %v1965, %v1965
        %v2187 = vpack.c.bf16 %v1967, %v1967
        %v2188 = vpack.c.bf16 %v1969, %v1969
        %v2189 = vpack.c.bf16 %v1971, %v1971
        %v2190 = vpack.c.bf16 %v1973, %v1973
        %v2191 = vpack.c.bf16 %v1975, %v1975
        %v2192 = vpack.c.bf16 %v1977, %v1977
        %v2193 = vpack.c.bf16 %v1979, %v1979
        %v2194 = vpack.c.bf16 %v1981, %v1981
        %v2195 = vpack.c.bf16 %v1983, %v1983
        %v2196 = vpack.c.bf16 %v1985, %v1985
        %v2197 = vpack.c.bf16 %v1987, %v1987
        %v2198 = vpack.c.bf16 %v1989, %v1989
        %v2199 = vpack.c.bf16 %v1991, %v1991
        %v2200 = vpack.c.bf16 %v1993, %v1993
        %v2201 = vpack.c.bf16 %v1995, %v1995
        %v2202 = vpack.c.bf16 %v1997, %v1997
        %v2203 = vpack.c.bf16 %v1999, %v1999
        %v2204 = vpack.c.bf16 %v2001, %v2001
        %v2205 = vpack.c.bf16 %v2003, %v2003
        %v2206 = vpack.c.bf16 %v2005, %v2005
        %v2207 = vpack.c.bf16 %v2007, %v2007
        %v2208 = vpack.c.bf16 %v2009, %v2009
        %v2209 = vpack.c.bf16 %v2011, %v2011
        %v2210 = vpack.c.bf16 %v2013, %v2013
        %v2211 = vpack.c.bf16 %v2015, %v2015
        %v2212 = vpack.c.bf16 %v2017, %v2017
        %v2213 = vpack.c.bf16 %v2019, %v2019
        %v2214 = vpack.c.bf16 %v2021, %v2021
        %v2215 = vpack.c.bf16 %v2023, %v2023
        %v2232 = vunpack.c.l.b16 %v2152
        %v2233 = vunpack.c.l.b16 %v2153
        %v2234 = vunpack.c.l.b16 %v2154
        %v2235 = vunpack.c.l.b16 %v2155
        %v2236 = vunpack.c.l.b16 %v2156
        %v2237 = vunpack.c.l.b16 %v2157
        %v2238 = vunpack.c.l.b16 %v2158
        %v2239 = vunpack.c.l.b16 %v2159
        %v2240 = vunpack.c.l.b16 %v2160
        %v2241 = vunpack.c.l.b16 %v2161
        %v2242 = vunpack.c.l.b16 %v2162
        %v2243 = vunpack.c.l.b16 %v2163
        %v2244 = vunpack.c.l.b16 %v2164
        %v2245 = vunpack.c.l.b16 %v2165
        %v2246 = vunpack.c.l.b16 %v2166
        %v2247 = vunpack.c.l.b16 %v2167
        %v2248 = vpack.c.b16 %v2233, %v2232
        %v2249 = vpack.c.b16 %v2235, %v2234
        %v2250 = vpack.c.b16 %v2237, %v2236
        %v2251 = vpack.c.b16 %v2239, %v2238
        %v2252 = vpack.c.b16 %v2241, %v2240
        %v2253 = vpack.c.b16 %v2243, %v2242
        %v2254 = vpack.c.b16 %v2245, %v2244
        %v2255 = vpack.c.b16 %v2247, %v2246
        %v2264 = vunpack.c.l.b16 %v720
        %v2265 = vunpack.c.l.b16 %v721
        %v2266 = vunpack.c.l.b16 %v722
        %v2267 = vunpack.c.l.b16 %v723
        %v2268 = vunpack.c.l.b16 %v724
        %v2269 = vunpack.c.l.b16 %v725
        %v2270 = vunpack.c.l.b16 %v726
        %v2271 = vunpack.c.l.b16 %v727
        %v2272 = vunpack.c.l.b16 %v728
        %v2273 = vunpack.c.l.b16 %v729
        %v2274 = vunpack.c.l.b16 %v730
        %v2275 = vunpack.c.l.b16 %v731
        %v2276 = vunpack.c.l.b16 %v732
        %v2277 = vunpack.c.l.b16 %v733
        %v2278 = vunpack.c.l.b16 %v734
        %v2279 = vunpack.c.l.b16 %v735
        %v2280 = vpack.c.b16 %v2265, %v2264
        %v2281 = vpack.c.b16 %v2267, %v2266
        %v2282 = vpack.c.b16 %v2269, %v2268
        %v2283 = vpack.c.b16 %v2271, %v2270
        %v2284 = vpack.c.b16 %v2273, %v2272
        %v2285 = vpack.c.b16 %v2275, %v2274
        %v2286 = vpack.c.b16 %v2277, %v2276
        %v2287 = vpack.c.b16 %v2279, %v2278
        %2296 = vmatpush.bf16.msra.mxu0 %v2287
        %2297 = vmatpush.bf16.msra.mxu0 %v2286
        %2298 = vmatpush.bf16.msra.mxu0 %v2285
        %2299 = vmatpush.bf16.msra.mxu0 %v2284
        %2300 = vmatpush.bf16.msra.mxu0 %v2283
        %2301 = vmatpush.bf16.msra.mxu0 %v2282
        %2302 = vmatpush.bf16.msra.mxu0 %v2281
        %2303 = vmatpush.bf16.msra.mxu0 %v2280
        %2304 = vmatmul.bf16.gmra.mxu0 %v2248
        %v2305 = vpop.f32.mrf.mxu0
        %v2306 = vadd.f32 0.0, %v2305
        %v2307 = vpop.f32.mrf.mxu0
        %v2308 = vadd.f32 0.0, %v2307
        %2309 = vmatmul.bf16.gmra.mxu0 %v2249
        %v2310 = vpop.f32.mrf.mxu0
        %v2311 = vadd.f32 0.0, %v2310
        %v2312 = vpop.f32.mrf.mxu0
        %v2313 = vadd.f32 0.0, %v2312
        %2314 = vmatmul.bf16.gmra.mxu0 %v2250
        %v2315 = vpop.f32.mrf.mxu0
        %v2316 = vadd.f32 0.0, %v2315
        %v2317 = vpop.f32.mrf.mxu0
        %v2318 = vadd.f32 0.0, %v2317
        %2319 = vmatmul.bf16.gmra.mxu0 %v2251
        %v2320 = vpop.f32.mrf.mxu0
        %v2321 = vadd.f32 0.0, %v2320
        %v2322 = vpop.f32.mrf.mxu0
        %v2323 = vadd.f32 0.0, %v2322
        %2324 = vmatmul.bf16.gmra.mxu0 %v2252
        %v2325 = vpop.f32.mrf.mxu0
        %v2326 = vadd.f32 0.0, %v2325
        %v2327 = vpop.f32.mrf.mxu0
        %v2328 = vadd.f32 0.0, %v2327
        %2329 = vmatmul.bf16.gmra.mxu0 %v2253
        %v2330 = vpop.f32.mrf.mxu0
        %v2331 = vadd.f32 0.0, %v2330
        %v2332 = vpop.f32.mrf.mxu0
        %v2333 = vadd.f32 0.0, %v2332
        %2334 = vmatmul.bf16.gmra.mxu0 %v2254
        %v2335 = vpop.f32.mrf.mxu0
        %v2336 = vadd.f32 0.0, %v2335
        %v2337 = vpop.f32.mrf.mxu0
        %v2338 = vadd.f32 0.0, %v2337
        %2339 = vmatmul.bf16.gmra.mxu0 %v2255
        %v2340 = vpop.f32.mrf.mxu0
        %v2341 = vadd.f32 0.0, %v2340
        %v2342 = vpop.f32.mrf.mxu0
        %v2343 = vadd.f32 0.0, %v2342
        %2344 = vdwg.mxu0
        %v2361 = vunpack.c.l.b16 %v2168
        %v2362 = vunpack.c.l.b16 %v2169
        %v2363 = vunpack.c.l.b16 %v2170
        %v2364 = vunpack.c.l.b16 %v2171
        %v2365 = vunpack.c.l.b16 %v2172
        %v2366 = vunpack.c.l.b16 %v2173
        %v2367 = vunpack.c.l.b16 %v2174
        %v2368 = vunpack.c.l.b16 %v2175
        %v2369 = vunpack.c.l.b16 %v2176
        %v2370 = vunpack.c.l.b16 %v2177
        %v2371 = vunpack.c.l.b16 %v2178
        %v2372 = vunpack.c.l.b16 %v2179
        %v2373 = vunpack.c.l.b16 %v2180
        %v2374 = vunpack.c.l.b16 %v2181
        %v2375 = vunpack.c.l.b16 %v2182
        %v2376 = vunpack.c.l.b16 %v2183
        %v2377 = vpack.c.b16 %v2362, %v2361
        %v2378 = vpack.c.b16 %v2364, %v2363
        %v2379 = vpack.c.b16 %v2366, %v2365
        %v2380 = vpack.c.b16 %v2368, %v2367
        %v2381 = vpack.c.b16 %v2370, %v2369
        %v2382 = vpack.c.b16 %v2372, %v2371
        %v2383 = vpack.c.b16 %v2374, %v2373
        %v2384 = vpack.c.b16 %v2376, %v2375
        %v2393 = vunpack.c.l.b16 %v977
        %v2394 = vunpack.c.l.b16 %v979
        %v2395 = vunpack.c.l.b16 %v981
        %v2396 = vunpack.c.l.b16 %v983
        %v2397 = vunpack.c.l.b16 %v985
        %v2398 = vunpack.c.l.b16 %v987
        %v2399 = vunpack.c.l.b16 %v989
        %v2400 = vunpack.c.l.b16 %v991
        %v2401 = vunpack.c.l.b16 %v993
        %v2402 = vunpack.c.l.b16 %v995
        %v2403 = vunpack.c.l.b16 %v997
        %v2404 = vunpack.c.l.b16 %v999
        %v2405 = vunpack.c.l.b16 %v1001
        %v2406 = vunpack.c.l.b16 %v1003
        %v2407 = vunpack.c.l.b16 %v1005
        %v2408 = vunpack.c.l.b16 %v1007
        %v2409 = vpack.c.b16 %v2394, %v2393
        %v2410 = vpack.c.b16 %v2396, %v2395
        %v2411 = vpack.c.b16 %v2398, %v2397
        %v2412 = vpack.c.b16 %v2400, %v2399
        %v2413 = vpack.c.b16 %v2402, %v2401
        %v2414 = vpack.c.b16 %v2404, %v2403
        %v2415 = vpack.c.b16 %v2406, %v2405
        %v2416 = vpack.c.b16 %v2408, %v2407
        %2425 = vmatpush.bf16.msra.mxu0 %v2416
        %2426 = vmatpush.bf16.msra.mxu0 %v2415
        %2427 = vmatpush.bf16.msra.mxu0 %v2414
        %2428 = vmatpush.bf16.msra.mxu0 %v2413
        %2429 = vmatpush.bf16.msra.mxu0 %v2412
        %2430 = vmatpush.bf16.msra.mxu0 %v2411
        %2431 = vmatpush.bf16.msra.mxu0 %v2410
        %2432 = vmatpush.bf16.msra.mxu0 %v2409
        %2433 = vmatmul.bf16.gmra.mxu0 %v2377
        %v2434 = vpop.f32.mrf.mxu0
        %v2435 = vadd.f32 0.0, %v2434
        %v2436 = vpop.f32.mrf.mxu0
        %v2437 = vadd.f32 0.0, %v2436
        %2438 = vmatmul.bf16.gmra.mxu0 %v2378
        %v2439 = vpop.f32.mrf.mxu0
        %v2440 = vadd.f32 0.0, %v2439
        %v2441 = vpop.f32.mrf.mxu0
        %v2442 = vadd.f32 0.0, %v2441
        %2443 = vmatmul.bf16.gmra.mxu0 %v2379
        %v2444 = vpop.f32.mrf.mxu0
        %v2445 = vadd.f32 0.0, %v2444
        %v2446 = vpop.f32.mrf.mxu0
        %v2447 = vadd.f32 0.0, %v2446
        %2448 = vmatmul.bf16.gmra.mxu0 %v2380
        %v2449 = vpop.f32.mrf.mxu0
        %v2450 = vadd.f32 0.0, %v2449
        %v2451 = vpop.f32.mrf.mxu0
        %v2452 = vadd.f32 0.0, %v2451
        %2453 = vmatmul.bf16.gmra.mxu0 %v2381
        %v2454 = vpop.f32.mrf.mxu0
        %v2455 = vadd.f32 0.0, %v2454
        %v2456 = vpop.f32.mrf.mxu0
        %v2457 = vadd.f32 0.0, %v2456
        %2458 = vmatmul.bf16.gmra.mxu0 %v2382
        %v2459 = vpop.f32.mrf.mxu0
        %v2460 = vadd.f32 0.0, %v2459
        %v2461 = vpop.f32.mrf.mxu0
        %v2462 = vadd.f32 0.0, %v2461
        %2463 = vmatmul.bf16.gmra.mxu0 %v2383
        %v2464 = vpop.f32.mrf.mxu0
        %v2465 = vadd.f32 0.0, %v2464
        %v2466 = vpop.f32.mrf.mxu0
        %v2467 = vadd.f32 0.0, %v2466
        %2468 = vmatmul.bf16.gmra.mxu0 %v2384
        %v2469 = vpop.f32.mrf.mxu0
        %v2470 = vadd.f32 0.0, %v2469
        %v2471 = vpop.f32.mrf.mxu0
        %v2472 = vadd.f32 0.0, %v2471
        %2473 = vdwg.mxu0
        %v2490 = vunpack.c.l.b16 %v2184
        %v2491 = vunpack.c.l.b16 %v2185
        %v2492 = vunpack.c.l.b16 %v2186
        %v2493 = vunpack.c.l.b16 %v2187
        %v2494 = vunpack.c.l.b16 %v2188
        %v2495 = vunpack.c.l.b16 %v2189
        %v2496 = vunpack.c.l.b16 %v2190
        %v2497 = vunpack.c.l.b16 %v2191
        %v2498 = vunpack.c.l.b16 %v2192
        %v2499 = vunpack.c.l.b16 %v2193
        %v2500 = vunpack.c.l.b16 %v2194
        %v2501 = vunpack.c.l.b16 %v2195
        %v2502 = vunpack.c.l.b16 %v2196
        %v2503 = vunpack.c.l.b16 %v2197
        %v2504 = vunpack.c.l.b16 %v2198
        %v2505 = vunpack.c.l.b16 %v2199
        %v2506 = vpack.c.b16 %v2491, %v2490
        %v2507 = vpack.c.b16 %v2493, %v2492
        %v2508 = vpack.c.b16 %v2495, %v2494
        %v2509 = vpack.c.b16 %v2497, %v2496
        %v2510 = vpack.c.b16 %v2499, %v2498
        %v2511 = vpack.c.b16 %v2501, %v2500
        %v2512 = vpack.c.b16 %v2503, %v2502
        %v2513 = vpack.c.b16 %v2505, %v2504
        %v2522 = vunpack.c.l.b16 %v1009
        %v2523 = vunpack.c.l.b16 %v1011
        %v2524 = vunpack.c.l.b16 %v1013
        %v2525 = vunpack.c.l.b16 %v1015
        %v2526 = vunpack.c.l.b16 %v1017
        %v2527 = vunpack.c.l.b16 %v1019
        %v2528 = vunpack.c.l.b16 %v1021
        %v2529 = vunpack.c.l.b16 %v1023
        %v2530 = vunpack.c.l.b16 %v1025
        %v2531 = vunpack.c.l.b16 %v1027
        %v2532 = vunpack.c.l.b16 %v1029
        %v2533 = vunpack.c.l.b16 %v1031
        %v2534 = vunpack.c.l.b16 %v1033
        %v2535 = vunpack.c.l.b16 %v1035
        %v2536 = vunpack.c.l.b16 %v1037
        %v2537 = vunpack.c.l.b16 %v1039
        %v2538 = vpack.c.b16 %v2523, %v2522
        %v2539 = vpack.c.b16 %v2525, %v2524
        %v2540 = vpack.c.b16 %v2527, %v2526
        %v2541 = vpack.c.b16 %v2529, %v2528
        %v2542 = vpack.c.b16 %v2531, %v2530
        %v2543 = vpack.c.b16 %v2533, %v2532
        %v2544 = vpack.c.b16 %v2535, %v2534
        %v2545 = vpack.c.b16 %v2537, %v2536
        %2554 = vmatpush.bf16.msra.mxu0 %v2545
        %2555 = vmatpush.bf16.msra.mxu0 %v2544
        %2556 = vmatpush.bf16.msra.mxu0 %v2543
        %2557 = vmatpush.bf16.msra.mxu0 %v2542
        %2558 = vmatpush.bf16.msra.mxu0 %v2541
        %2559 = vmatpush.bf16.msra.mxu0 %v2540
        %2560 = vmatpush.bf16.msra.mxu0 %v2539
        %2561 = vmatpush.bf16.msra.mxu0 %v2538
        %2562 = vmatmul.bf16.gmra.mxu0 %v2506
        %v2563 = vpop.f32.mrf.mxu0
        %v2564 = vadd.f32 0.0, %v2563
        %v2565 = vpop.f32.mrf.mxu0
        %v2566 = vadd.f32 0.0, %v2565
        %2567 = vmatmul.bf16.gmra.mxu0 %v2507
        %v2568 = vpop.f32.mrf.mxu0
        %v2569 = vadd.f32 0.0, %v2568
        %v2570 = vpop.f32.mrf.mxu0
        %v2571 = vadd.f32 0.0, %v2570
        %2572 = vmatmul.bf16.gmra.mxu0 %v2508
        %v2573 = vpop.f32.mrf.mxu0
        %v2574 = vadd.f32 0.0, %v2573
        %v2575 = vpop.f32.mrf.mxu0
        %v2576 = vadd.f32 0.0, %v2575
        %2577 = vmatmul.bf16.gmra.mxu0 %v2509
        %v2578 = vpop.f32.mrf.mxu0
        %v2579 = vadd.f32 0.0, %v2578
        %v2580 = vpop.f32.mrf.mxu0
        %v2581 = vadd.f32 0.0, %v2580
        %2582 = vmatmul.bf16.gmra.mxu0 %v2510
        %v2583 = vpop.f32.mrf.mxu0
        %v2584 = vadd.f32 0.0, %v2583
        %v2585 = vpop.f32.mrf.mxu0
        %v2586 = vadd.f32 0.0, %v2585
        %2587 = vmatmul.bf16.gmra.mxu0 %v2511
        %v2588 = vpop.f32.mrf.mxu0
        %v2589 = vadd.f32 0.0, %v2588
        %v2590 = vpop.f32.mrf.mxu0
        %v2591 = vadd.f32 0.0, %v2590
        %2592 = vmatmul.bf16.gmra.mxu0 %v2512
        %v2593 = vpop.f32.mrf.mxu0
        %v2594 = vadd.f32 0.0, %v2593
        %v2595 = vpop.f32.mrf.mxu0
        %v2596 = vadd.f32 0.0, %v2595
        %2597 = vmatmul.bf16.gmra.mxu0 %v2513
        %v2598 = vpop.f32.mrf.mxu0
        %v2599 = vadd.f32 0.0, %v2598
        %v2600 = vpop.f32.mrf.mxu0
        %v2601 = vadd.f32 0.0, %v2600
        %2602 = vdwg.mxu0
        %v2619 = vunpack.c.l.b16 %v2200
        %v2620 = vunpack.c.l.b16 %v2201
        %v2621 = vunpack.c.l.b16 %v2202
        %v2622 = vunpack.c.l.b16 %v2203
        %v2623 = vunpack.c.l.b16 %v2204
        %v2624 = vunpack.c.l.b16 %v2205
        %v2625 = vunpack.c.l.b16 %v2206
        %v2626 = vunpack.c.l.b16 %v2207
        %v2627 = vunpack.c.l.b16 %v2208
        %v2628 = vunpack.c.l.b16 %v2209
        %v2629 = vunpack.c.l.b16 %v2210
        %v2630 = vunpack.c.l.b16 %v2211
        %v2631 = vunpack.c.l.b16 %v2212
        %v2632 = vunpack.c.l.b16 %v2213
        %v2633 = vunpack.c.l.b16 %v2214
        %v2634 = vunpack.c.l.b16 %v2215
        %v2635 = vpack.c.b16 %v2620, %v2619
        %v2636 = vpack.c.b16 %v2622, %v2621
        %v2637 = vpack.c.b16 %v2624, %v2623
        %v2638 = vpack.c.b16 %v2626, %v2625
        %v2639 = vpack.c.b16 %v2628, %v2627
        %v2640 = vpack.c.b16 %v2630, %v2629
        %v2641 = vpack.c.b16 %v2632, %v2631
        %v2642 = vpack.c.b16 %v2634, %v2633
        %v2651 = vunpack.c.l.b16 %v1041
        %v2652 = vunpack.c.l.b16 %v1043
        %v2653 = vunpack.c.l.b16 %v1045
        %v2654 = vunpack.c.l.b16 %v1047
        %v2655 = vunpack.c.l.b16 %v1049
        %v2656 = vunpack.c.l.b16 %v1051
        %v2657 = vunpack.c.l.b16 %v1053
        %v2658 = vunpack.c.l.b16 %v1055
        %v2659 = vunpack.c.l.b16 %v1057
        %v2660 = vunpack.c.l.b16 %v1059
        %v2661 = vunpack.c.l.b16 %v1061
        %v2662 = vunpack.c.l.b16 %v1063
        %v2663 = vunpack.c.l.b16 %v1065
        %v2664 = vunpack.c.l.b16 %v1067
        %v2665 = vunpack.c.l.b16 %v1069
        %v2666 = vunpack.c.l.b16 %v1071
        %v2667 = vpack.c.b16 %v2652, %v2651
        %v2668 = vpack.c.b16 %v2654, %v2653
        %v2669 = vpack.c.b16 %v2656, %v2655
        %v2670 = vpack.c.b16 %v2658, %v2657
        %v2671 = vpack.c.b16 %v2660, %v2659
        %v2672 = vpack.c.b16 %v2662, %v2661
        %v2673 = vpack.c.b16 %v2664, %v2663
        %v2674 = vpack.c.b16 %v2666, %v2665
        %2683 = vmatpush.bf16.msra.mxu0 %v2674
        %2684 = vmatpush.bf16.msra.mxu0 %v2673
        %2685 = vmatpush.bf16.msra.mxu0 %v2672
        %2686 = vmatpush.bf16.msra.mxu0 %v2671
        %2687 = vmatpush.bf16.msra.mxu0 %v2670
        %2688 = vmatpush.bf16.msra.mxu0 %v2669
        %2689 = vmatpush.bf16.msra.mxu0 %v2668
        %2690 = vmatpush.bf16.msra.mxu0 %v2667
        %2691 = vmatmul.bf16.gmra.mxu0 %v2635
        %v2692 = vpop.f32.mrf.mxu0
        %v2693 = vadd.f32 0.0, %v2692
        %v2694 = vpop.f32.mrf.mxu0
        %v2695 = vadd.f32 0.0, %v2694
        %2696 = vmatmul.bf16.gmra.mxu0 %v2636
        %v2697 = vpop.f32.mrf.mxu0
        %v2698 = vadd.f32 0.0, %v2697
        %v2699 = vpop.f32.mrf.mxu0
        %v2700 = vadd.f32 0.0, %v2699
        %2701 = vmatmul.bf16.gmra.mxu0 %v2637
        %v2702 = vpop.f32.mrf.mxu0
        %v2703 = vadd.f32 0.0, %v2702
        %v2704 = vpop.f32.mrf.mxu0
        %v2705 = vadd.f32 0.0, %v2704
        %2706 = vmatmul.bf16.gmra.mxu0 %v2638
        %v2707 = vpop.f32.mrf.mxu0
        %v2708 = vadd.f32 0.0, %v2707
        %v2709 = vpop.f32.mrf.mxu0
        %v2710 = vadd.f32 0.0, %v2709
        %2711 = vmatmul.bf16.gmra.mxu0 %v2639
        %v2712 = vpop.f32.mrf.mxu0
        %v2713 = vadd.f32 0.0, %v2712
        %v2714 = vpop.f32.mrf.mxu0
        %v2715 = vadd.f32 0.0, %v2714
        %2716 = vmatmul.bf16.gmra.mxu0 %v2640
        %v2717 = vpop.f32.mrf.mxu0
        %v2718 = vadd.f32 0.0, %v2717
        %v2719 = vpop.f32.mrf.mxu0
        %v2720 = vadd.f32 0.0, %v2719
        %2721 = vmatmul.bf16.gmra.mxu0 %v2641
        %v2722 = vpop.f32.mrf.mxu0
        %v2723 = vadd.f32 0.0, %v2722
        %v2724 = vpop.f32.mrf.mxu0
        %v2725 = vadd.f32 0.0, %v2724
        %2726 = vmatmul.bf16.gmra.mxu0 %v2642
        %v2727 = vpop.f32.mrf.mxu0
        %v2728 = vadd.f32 0.0, %v2727
        %v2729 = vpop.f32.mrf.mxu0
        %v2730 = vadd.f32 0.0, %v2729
        %2731 = vdwg.mxu0
        %v2732 = vrcp.pop %v2025
        %v2733 = vrcp.pop %v2027
        %v2734 = vrcp.pop %v2029
        %v2735 = vrcp.pop %v2031
        %v2736 = vrcp.pop %v2033
        %v2737 = vrcp.pop %v2035
        %v2738 = vrcp.pop %v2037
        %v2739 = vrcp.pop %v2039
        %v2740 = vrcp.pop %v2041
        %v2741 = vrcp.pop %v2043
        %v2742 = vrcp.pop %v2045
        %v2743 = vrcp.pop %v2047
        %v2744 = vrcp.pop %v2049
        %v2745 = vrcp.pop %v2051
        %v2746 = vrcp.pop %v2053
        %v2747 = vrcp.pop %v2055
        %v2748 = vrcp.pop %v2057
        %v2749 = vrcp.pop %v2059
        %v2750 = vrcp.pop %v2061
        %v2751 = vrcp.pop %v2063
        %v2752 = vrcp.pop %v2065
        %v2753 = vrcp.pop %v2067
        %v2754 = vrcp.pop %v2069
        %v2755 = vrcp.pop %v2071
        %v2756 = vrcp.pop %v2073
        %v2757 = vrcp.pop %v2075
        %v2758 = vrcp.pop %v2077
        %v2759 = vrcp.pop %v2079
        %v2760 = vrcp.pop %v2081
        %v2761 = vrcp.pop %v2083
        %v2762 = vrcp.pop %v2085
        %v2763 = vrcp.pop %v2087
        %v2764 = vrcp.pop %v2089
        %v2765 = vrcp.pop %v2091
        %v2766 = vrcp.pop %v2093
        %v2767 = vrcp.pop %v2095
        %v2768 = vrcp.pop %v2097
        %v2769 = vrcp.pop %v2099
        %v2770 = vrcp.pop %v2101
        %v2771 = vrcp.pop %v2103
        %v2772 = vrcp.pop %v2105
        %v2773 = vrcp.pop %v2107
        %v2774 = vrcp.pop %v2109
        %v2775 = vrcp.pop %v2111
        %v2776 = vrcp.pop %v2113
        %v2777 = vrcp.pop %v2115
        %v2778 = vrcp.pop %v2117
        %v2779 = vrcp.pop %v2119
        %v2780 = vrcp.pop %v2121
        %v2781 = vrcp.pop %v2123
        %v2782 = vrcp.pop %v2125
        %v2783 = vrcp.pop %v2127
        %v2784 = vrcp.pop %v2129
        %v2785 = vrcp.pop %v2131
        %v2786 = vrcp.pop %v2133
        %v2787 = vrcp.pop %v2135
        %v2788 = vrcp.pop %v2137
        %v2789 = vrcp.pop %v2139
        %v2790 = vrcp.pop %v2141
        %v2791 = vrcp.pop %v2143
        %v2792 = vrcp.pop %v2145
        %v2793 = vrcp.pop %v2147
        %v2794 = vrcp.pop %v2149
        %v2795 = vrcp.pop %v2151
        %v2796 = vmul.f32 %v2306, %v2732
        %v2797 = vmul.f32 %v2308, %v2733
        %v2798 = vmul.f32 %v2311, %v2734
        %v2799 = vmul.f32 %v2313, %v2735
        %v2800 = vmul.f32 %v2316, %v2736
        %v2801 = vmul.f32 %v2318, %v2737
        %v2802 = vmul.f32 %v2321, %v2738
        %v2803 = vmul.f32 %v2323, %v2739
        %v2804 = vmul.f32 %v2326, %v2740
        %v2805 = vmul.f32 %v2328, %v2741
        %v2806 = vmul.f32 %v2331, %v2742
        %v2807 = vmul.f32 %v2333, %v2743
        %v2808 = vmul.f32 %v2336, %v2744
        %v2809 = vmul.f32 %v2338, %v2745
        %v2810 = vmul.f32 %v2341, %v2746
        %v2811 = vmul.f32 %v2343, %v2747
        %v2812 = vmul.f32 %v2435, %v2748
        %v2813 = vmul.f32 %v2437, %v2749
        %v2814 = vmul.f32 %v2440, %v2750
        %v2815 = vmul.f32 %v2442, %v2751
        %v2816 = vmul.f32 %v2445, %v2752
        %v2817 = vmul.f32 %v2447, %v2753
        %v2818 = vmul.f32 %v2450, %v2754
        %v2819 = vmul.f32 %v2452, %v2755
        %v2820 = vmul.f32 %v2455, %v2756
        %v2821 = vmul.f32 %v2457, %v2757
        %v2822 = vmul.f32 %v2460, %v2758
        %v2823 = vmul.f32 %v2462, %v2759
        %v2824 = vmul.f32 %v2465, %v2760
        %v2825 = vmul.f32 %v2467, %v2761
        %v2826 = vmul.f32 %v2470, %v2762
        %v2827 = vmul.f32 %v2472, %v2763
        %v2828 = vmul.f32 %v2564, %v2764
        %v2829 = vmul.f32 %v2566, %v2765
        %v2830 = vmul.f32 %v2569, %v2766
        %v2831 = vmul.f32 %v2571, %v2767
        %v2832 = vmul.f32 %v2574, %v2768
        %v2833 = vmul.f32 %v2576, %v2769
        %v2834 = vmul.f32 %v2579, %v2770
        %v2835 = vmul.f32 %v2581, %v2771
        %v2836 = vmul.f32 %v2584, %v2772
        %v2837 = vmul.f32 %v2586, %v2773
        %v2838 = vmul.f32 %v2589, %v2774
        %v2839 = vmul.f32 %v2591, %v2775
        %v2840 = vmul.f32 %v2594, %v2776
        %v2841 = vmul.f32 %v2596, %v2777
        %v2842 = vmul.f32 %v2599, %v2778
        %v2843 = vmul.f32 %v2601, %v2779
        %v2844 = vmul.f32 %v2693, %v2780
        %v2845 = vmul.f32 %v2695, %v2781
        %v2846 = vmul.f32 %v2698, %v2782
        %v2847 = vmul.f32 %v2700, %v2783
        %v2848 = vmul.f32 %v2703, %v2784
        %v2849 = vmul.f32 %v2705, %v2785
        %v2850 = vmul.f32 %v2708, %v2786
        %v2851 = vmul.f32 %v2710, %v2787
        %v2852 = vmul.f32 %v2713, %v2788
        %v2853 = vmul.f32 %v2715, %v2789
        %v2854 = vmul.f32 %v2718, %v2790
        %v2855 = vmul.f32 %v2720, %v2791
        %v2856 = vmul.f32 %v2723, %v2792
        %v2857 = vmul.f32 %v2725, %v2793
        %v2858 = vmul.f32 %v2728, %v2794
        %v2859 = vmul.f32 %v2730, %v2795
        %v2860 = vpack.c.bf16 %v2796, %v2796
        %v2861 = vpack.c.bf16 %v2797, %v2797
        %v2862 = vpack.c.bf16 %v2798, %v2798
        %v2863 = vpack.c.bf16 %v2799, %v2799
        %v2864 = vpack.c.bf16 %v2800, %v2800
        %v2865 = vpack.c.bf16 %v2801, %v2801
        %v2866 = vpack.c.bf16 %v2802, %v2802
        %v2867 = vpack.c.bf16 %v2803, %v2803
        %v2868 = vpack.c.bf16 %v2804, %v2804
        %v2869 = vpack.c.bf16 %v2805, %v2805
        %v2870 = vpack.c.bf16 %v2806, %v2806
        %v2871 = vpack.c.bf16 %v2807, %v2807
        %v2872 = vpack.c.bf16 %v2808, %v2808
        %v2873 = vpack.c.bf16 %v2809, %v2809
        %v2874 = vpack.c.bf16 %v2810, %v2810
        %v2875 = vpack.c.bf16 %v2811, %v2811
        %v2876 = vpack.c.bf16 %v2812, %v2812
        %v2877 = vpack.c.bf16 %v2813, %v2813
        %v2878 = vpack.c.bf16 %v2814, %v2814
        %v2879 = vpack.c.bf16 %v2815, %v2815
        %v2880 = vpack.c.bf16 %v2816, %v2816
        %v2881 = vpack.c.bf16 %v2817, %v2817
        %v2882 = vpack.c.bf16 %v2818, %v2818
        %v2883 = vpack.c.bf16 %v2819, %v2819
        %v2884 = vpack.c.bf16 %v2820, %v2820
        %v2885 = vpack.c.bf16 %v2821, %v2821
        %v2886 = vpack.c.bf16 %v2822, %v2822
        %v2887 = vpack.c.bf16 %v2823, %v2823
        %v2888 = vpack.c.bf16 %v2824, %v2824
        %v2889 = vpack.c.bf16 %v2825, %v2825
        %v2890 = vpack.c.bf16 %v2826, %v2826
        %v2891 = vpack.c.bf16 %v2827, %v2827
        %v2892 = vpack.c.bf16 %v2828, %v2828
        %v2893 = vpack.c.bf16 %v2829, %v2829
        %v2894 = vpack.c.bf16 %v2830, %v2830
        %v2895 = vpack.c.bf16 %v2831, %v2831
        %v2896 = vpack.c.bf16 %v2832, %v2832
        %v2897 = vpack.c.bf16 %v2833, %v2833
        %v2898 = vpack.c.bf16 %v2834, %v2834
        %v2899 = vpack.c.bf16 %v2835, %v2835
        %v2900 = vpack.c.bf16 %v2836, %v2836
        %v2901 = vpack.c.bf16 %v2837, %v2837
        %v2902 = vpack.c.bf16 %v2838, %v2838
        %v2903 = vpack.c.bf16 %v2839, %v2839
        %v2904 = vpack.c.bf16 %v2840, %v2840
        %v2905 = vpack.c.bf16 %v2841, %v2841
        %v2906 = vpack.c.bf16 %v2842, %v2842
        %v2907 = vpack.c.bf16 %v2843, %v2843
        %v2908 = vpack.c.bf16 %v2844, %v2844
        %v2909 = vpack.c.bf16 %v2845, %v2845
        %v2910 = vpack.c.bf16 %v2846, %v2846
        %v2911 = vpack.c.bf16 %v2847, %v2847
        %v2912 = vpack.c.bf16 %v2848, %v2848
        %v2913 = vpack.c.bf16 %v2849, %v2849
        %v2914 = vpack.c.bf16 %v2850, %v2850
        %v2915 = vpack.c.bf16 %v2851, %v2851
        %v2916 = vpack.c.bf16 %v2852, %v2852
        %v2917 = vpack.c.bf16 %v2853, %v2853
        %v2918 = vpack.c.bf16 %v2854, %v2854
        %v2919 = vpack.c.bf16 %v2855, %v2855
        %v2920 = vpack.c.bf16 %v2856, %v2856
        %v2921 = vpack.c.bf16 %v2857, %v2857
        %v2922 = vpack.c.bf16 %v2858, %v2858
        %v2923 = vpack.c.bf16 %v2859, %v2859
        %v2940 = vunpack.c.l.b16 %v2860
        %v2941 = vunpack.c.l.b16 %v2861
        %v2942 = vunpack.c.l.b16 %v2862
        %v2943 = vunpack.c.l.b16 %v2863
        %v2944 = vunpack.c.l.b16 %v2864
        %v2945 = vunpack.c.l.b16 %v2865
        %v2946 = vunpack.c.l.b16 %v2866
        %v2947 = vunpack.c.l.b16 %v2867
        %v2948 = vunpack.c.l.b16 %v2868
        %v2949 = vunpack.c.l.b16 %v2869
        %v2950 = vunpack.c.l.b16 %v2870
        %v2951 = vunpack.c.l.b16 %v2871
        %v2952 = vunpack.c.l.b16 %v2872
        %v2953 = vunpack.c.l.b16 %v2873
        %v2954 = vunpack.c.l.b16 %v2874
        %v2955 = vunpack.c.l.b16 %v2875
        %v2956 = vpack.c.b16 %v2941, %v2940
        %v2957 = vpack.c.b16 %v2943, %v2942
        %v2958 = vpack.c.b16 %v2945, %v2944
        %v2959 = vpack.c.b16 %v2947, %v2946
        %v2960 = vpack.c.b16 %v2949, %v2948
        %v2961 = vpack.c.b16 %v2951, %v2950
        %v2962 = vpack.c.b16 %v2953, %v2952
        %v2963 = vpack.c.b16 %v2955, %v2954
        %v2980 = vunpack.c.l.b16 %v2876
        %v2981 = vunpack.c.l.b16 %v2877
        %v2982 = vunpack.c.l.b16 %v2878
        %v2983 = vunpack.c.l.b16 %v2879
        %v2984 = vunpack.c.l.b16 %v2880
        %v2985 = vunpack.c.l.b16 %v2881
        %v2986 = vunpack.c.l.b16 %v2882
        %v2987 = vunpack.c.l.b16 %v2883
        %v2988 = vunpack.c.l.b16 %v2884
        %v2989 = vunpack.c.l.b16 %v2885
        %v2990 = vunpack.c.l.b16 %v2886
        %v2991 = vunpack.c.l.b16 %v2887
        %v2992 = vunpack.c.l.b16 %v2888
        %v2993 = vunpack.c.l.b16 %v2889
        %v2994 = vunpack.c.l.b16 %v2890
        %v2995 = vunpack.c.l.b16 %v2891
        %v2996 = vpack.c.b16 %v2981, %v2980
        %v2997 = vpack.c.b16 %v2983, %v2982
        %v2998 = vpack.c.b16 %v2985, %v2984
        %v2999 = vpack.c.b16 %v2987, %v2986
        %v3000 = vpack.c.b16 %v2989, %v2988
        %v3001 = vpack.c.b16 %v2991, %v2990
        %v3002 = vpack.c.b16 %v2993, %v2992
        %v3003 = vpack.c.b16 %v2995, %v2994
        %3004 = vrot.lane.b32.xlu0 %v2996, 32
        %v3005 = vpop.permute.xlu0 %3004
        %3006 = vrot.lane.b32.xlu0 %v2997, 32
        %v3007 = vpop.permute.xlu0 %3006
        %3008 = vrot.lane.b32.xlu0 %v2998, 32
        %v3009 = vpop.permute.xlu0 %3008
        %3010 = vrot.lane.b32.xlu0 %v2999, 32
        %v3011 = vpop.permute.xlu0 %3010
        %3012 = vrot.lane.b32.xlu0 %v3000, 32
        %v3013 = vpop.permute.xlu0 %3012
        %3014 = vrot.lane.b32.xlu0 %v3001, 32
        %v3015 = vpop.permute.xlu0 %3014
        %3016 = vrot.lane.b32.xlu0 %v3002, 32
        %v3017 = vpop.permute.xlu0 %3016
        %3018 = vrot.lane.b32.xlu0 %v3003, 32
        %v3019 = vpop.permute.xlu0 %3018
        %v3036 = vunpack.c.l.b16 %v2892
        %v3037 = vunpack.c.l.b16 %v2893
        %v3038 = vunpack.c.l.b16 %v2894
        %v3039 = vunpack.c.l.b16 %v2895
        %v3040 = vunpack.c.l.b16 %v2896
        %v3041 = vunpack.c.l.b16 %v2897
        %v3042 = vunpack.c.l.b16 %v2898
        %v3043 = vunpack.c.l.b16 %v2899
        %v3044 = vunpack.c.l.b16 %v2900
        %v3045 = vunpack.c.l.b16 %v2901
        %v3046 = vunpack.c.l.b16 %v2902
        %v3047 = vunpack.c.l.b16 %v2903
        %v3048 = vunpack.c.l.b16 %v2904
        %v3049 = vunpack.c.l.b16 %v2905
        %v3050 = vunpack.c.l.b16 %v2906
        %v3051 = vunpack.c.l.b16 %v2907
        %v3052 = vpack.c.b16 %v3037, %v3036
        %v3053 = vpack.c.b16 %v3039, %v3038
        %v3054 = vpack.c.b16 %v3041, %v3040
        %v3055 = vpack.c.b16 %v3043, %v3042
        %v3056 = vpack.c.b16 %v3045, %v3044
        %v3057 = vpack.c.b16 %v3047, %v3046
        %v3058 = vpack.c.b16 %v3049, %v3048
        %v3059 = vpack.c.b16 %v3051, %v3050
        %3060 = vrot.lane.b32.xlu0 %v3052, 64
        %v3061 = vpop.permute.xlu0 %3060
        %3062 = vrot.lane.b32.xlu0 %v3053, 64
        %v3063 = vpop.permute.xlu0 %3062
        %3064 = vrot.lane.b32.xlu0 %v3054, 64
        %v3065 = vpop.permute.xlu0 %3064
        %3066 = vrot.lane.b32.xlu0 %v3055, 64
        %v3067 = vpop.permute.xlu0 %3066
        %3068 = vrot.lane.b32.xlu0 %v3056, 64
        %v3069 = vpop.permute.xlu0 %3068
        %3070 = vrot.lane.b32.xlu0 %v3057, 64
        %v3071 = vpop.permute.xlu0 %3070
        %3072 = vrot.lane.b32.xlu0 %v3058, 64
        %v3073 = vpop.permute.xlu0 %3072
        %3074 = vrot.lane.b32.xlu0 %v3059, 64
        %v3075 = vpop.permute.xlu0 %3074
        %v3092 = vunpack.c.l.b16 %v2908
        %v3093 = vunpack.c.l.b16 %v2909
        %v3094 = vunpack.c.l.b16 %v2910
        %v3095 = vunpack.c.l.b16 %v2911
        %v3096 = vunpack.c.l.b16 %v2912
        %v3097 = vunpack.c.l.b16 %v2913
        %v3098 = vunpack.c.l.b16 %v2914
        %v3099 = vunpack.c.l.b16 %v2915
        %v3100 = vunpack.c.l.b16 %v2916
        %v3101 = vunpack.c.l.b16 %v2917
        %v3102 = vunpack.c.l.b16 %v2918
        %v3103 = vunpack.c.l.b16 %v2919
        %v3104 = vunpack.c.l.b16 %v2920
        %v3105 = vunpack.c.l.b16 %v2921
        %v3106 = vunpack.c.l.b16 %v2922
        %v3107 = vunpack.c.l.b16 %v2923
        %v3108 = vpack.c.b16 %v3093, %v3092
        %v3109 = vpack.c.b16 %v3095, %v3094
        %v3110 = vpack.c.b16 %v3097, %v3096
        %v3111 = vpack.c.b16 %v3099, %v3098
        %v3112 = vpack.c.b16 %v3101, %v3100
        %v3113 = vpack.c.b16 %v3103, %v3102
        %v3114 = vpack.c.b16 %v3105, %v3104
        %v3115 = vpack.c.b16 %v3107, %v3106
        %3116 = vrot.lane.b32.xlu0 %v3108, 96
        %v3117 = vpop.permute.xlu0 %3116
        %3118 = vrot.lane.b32.xlu0 %v3109, 96
        %v3119 = vpop.permute.xlu0 %3118
        %3120 = vrot.lane.b32.xlu0 %v3110, 96
        %v3121 = vpop.permute.xlu0 %3120
        %3122 = vrot.lane.b32.xlu0 %v3111, 96
        %v3123 = vpop.permute.xlu0 %3122
        %3124 = vrot.lane.b32.xlu0 %v3112, 96
        %v3125 = vpop.permute.xlu0 %3124
        %3126 = vrot.lane.b32.xlu0 %v3113, 96
        %v3127 = vpop.permute.xlu0 %3126
        %3128 = vrot.lane.b32.xlu0 %v3114, 96
        %v3129 = vpop.permute.xlu0 %3128
        %3130 = vrot.lane.b32.xlu0 %v3115, 96
        %v3131 = vpop.permute.xlu0 %3130
        %v3134 = vsel %vm1171, %v2956, %v3005
        %v3137 = vsel %vm1171, %v2957, %v3007
        %v3140 = vsel %vm1171, %v2958, %v3009
        %v3143 = vsel %vm1171, %v2959, %v3011
        %v3146 = vsel %vm1171, %v2960, %v3013
        %v3149 = vsel %vm1171, %v2961, %v3015
        %v3152 = vsel %vm1171, %v2962, %v3017
        %v3155 = vsel %vm1171, %v2963, %v3019
        %vm3156 = vcmask 523264
        %v3158 = vsel %vm3156, %v3134, %v3061
        %v3160 = vsel %vm3156, %v3137, %v3063
        %v3162 = vsel %vm3156, %v3140, %v3065
        %v3164 = vsel %vm3156, %v3143, %v3067
        %v3166 = vsel %vm3156, %v3146, %v3069
        %v3168 = vsel %vm3156, %v3149, %v3071
        %v3170 = vsel %vm3156, %v3152, %v3073
        %v3172 = vsel %vm3156, %v3155, %v3075
        %vm3173 = vcmask 785408
        %v3175 = vsel %vm3173, %v3158, %v3117
        %v3178 = vsel %vm3173, %v3160, %v3119
        %v3181 = vsel %vm3173, %v3162, %v3121
        %v3184 = vsel %vm3173, %v3164, %v3123
        %v3187 = vsel %vm3173, %v3166, %v3125
        %v3190 = vsel %vm3173, %v3168, %v3127
        %v3193 = vsel %vm3173, %v3170, %v3129
        %v3196 = vsel %vm3173, %v3172, %v3131
        %v3198 = vld [vmem:[#allocation8] sm:$0xf]
        %v3199 = vld [vmem:[#allocation8 + $0x4] sm:$0xf]
        %v3200 = vld [vmem:[#allocation8 + $0x8] sm:$0xf]
        %v3201 = vld [vmem:[#allocation8 + $0xc] sm:$0xf]
        %v3202 = vld [vmem:[#allocation8 + $0x10] sm:$0xf]
        %v3203 = vld [vmem:[#allocation8 + $0x14] sm:$0xf]
        %v3204 = vld [vmem:[#allocation8 + $0x18] sm:$0xf]
        %v3205 = vld [vmem:[#allocation8 + $0x1c] sm:$0xf]
        %v3206 = vld [vmem:[#allocation8 + $0x20] sm:$0xf]
        %v3207 = vld [vmem:[#allocation8 + $0x24] sm:$0xf]
        %v3208 = vld [vmem:[#allocation8 + $0x28] sm:$0xf]
        %v3209 = vld [vmem:[#allocation8 + $0x2c] sm:$0xf]
        %v3210 = vld [vmem:[#allocation8 + $0x30] sm:$0xf]
        %v3211 = vld [vmem:[#allocation8 + $0x34] sm:$0xf]
        %v3212 = vld [vmem:[#allocation8 + $0x38] sm:$0xf]
        %v3213 = vld [vmem:[#allocation8 + $0x3c] sm:$0xf]
        %v3214 = vld [vmem:[%s4] sm:$0x1]
        %v3216 = vperm.slane %v3214, 0
        %v3234 = vunpack.c.l.b16 %v3198
        %v3235 = vunpack.c.l.b16 %v3199
        %v3236 = vunpack.c.l.b16 %v3200
        %v3237 = vunpack.c.l.b16 %v3201
        %v3238 = vunpack.c.l.b16 %v3202
        %v3239 = vunpack.c.l.b16 %v3203
        %v3240 = vunpack.c.l.b16 %v3204
        %v3241 = vunpack.c.l.b16 %v3205
        %v3242 = vunpack.c.l.b16 %v3206
        %v3243 = vunpack.c.l.b16 %v3207
        %v3244 = vunpack.c.l.b16 %v3208
        %v3245 = vunpack.c.l.b16 %v3209
        %v3246 = vunpack.c.l.b16 %v3210
        %v3247 = vunpack.c.l.b16 %v3211
        %v3248 = vunpack.c.l.b16 %v3212
        %v3249 = vunpack.c.l.b16 %v3213
        %v3250 = vpack.c.b16 %v3235, %v3234
        %v3251 = vpack.c.b16 %v3237, %v3236
        %v3252 = vpack.c.b16 %v3239, %v3238
        %v3253 = vpack.c.b16 %v3241, %v3240
        %v3254 = vpack.c.b16 %v3243, %v3242
        %v3255 = vpack.c.b16 %v3245, %v3244
        %v3256 = vpack.c.b16 %v3247, %v3246
        %v3257 = vpack.c.b16 %v3249, %v3248
        %3266 = vmatpush.bf16.msra.mxu0 %v3257
        %3267 = vmatpush.bf16.msra.mxu0 %v3256
        %3268 = vmatpush.bf16.msra.mxu0 %v3255
        %3269 = vmatpush.bf16.msra.mxu0 %v3254
        %3270 = vmatpush.bf16.msra.mxu0 %v3253
        %3271 = vmatpush.bf16.msra.mxu0 %v3252
        %3272 = vmatpush.bf16.msra.mxu0 %v3251
        %3273 = vmatpush.bf16.msra.mxu0 %v3250
        %3274 = vmatmul.bf16.gmra.mxu0 %v3175
        %v3275 = vpop.f32.mrf.mxu0
        %v3276 = vadd.f32 %v3216, %v3275
        %v3277 = vpop.f32.mrf.mxu0
        %v3278 = vadd.f32 %v3216, %v3277
        %3279 = vmatmul.bf16.gmra.mxu0 %v3178
        %v3280 = vpop.f32.mrf.mxu0
        %v3281 = vadd.f32 %v3216, %v3280
        %v3282 = vpop.f32.mrf.mxu0
        %v3283 = vadd.f32 %v3216, %v3282
        %3284 = vmatmul.bf16.gmra.mxu0 %v3181
        %v3285 = vpop.f32.mrf.mxu0
        %v3286 = vadd.f32 %v3216, %v3285
        %v3287 = vpop.f32.mrf.mxu0
        %v3288 = vadd.f32 %v3216, %v3287
        %3289 = vmatmul.bf16.gmra.mxu0 %v3184
        %v3290 = vpop.f32.mrf.mxu0
        %v3291 = vadd.f32 %v3216, %v3290
        %v3292 = vpop.f32.mrf.mxu0
        %v3293 = vadd.f32 %v3216, %v3292
        %3294 = vmatmul.bf16.gmra.mxu0 %v3187
        %v3295 = vpop.f32.mrf.mxu0
        %v3296 = vadd.f32 %v3216, %v3295
        %v3297 = vpop.f32.mrf.mxu0
        %v3298 = vadd.f32 %v3216, %v3297
        %3299 = vmatmul.bf16.gmra.mxu0 %v3190
        %v3300 = vpop.f32.mrf.mxu0
        %v3301 = vadd.f32 %v3216, %v3300
        %v3302 = vpop.f32.mrf.mxu0
        %v3303 = vadd.f32 %v3216, %v3302
        %3304 = vmatmul.bf16.gmra.mxu0 %v3193
        %v3305 = vpop.f32.mrf.mxu0
        %v3306 = vadd.f32 %v3216, %v3305
        %v3307 = vpop.f32.mrf.mxu0
        %v3308 = vadd.f32 %v3216, %v3307
        %3309 = vmatmul.bf16.gmra.mxu0 %v3196
        %v3310 = vpop.f32.mrf.mxu0
        %v3311 = vadd.f32 %v3216, %v3310
        %v3312 = vpop.f32.mrf.mxu0
        %v3313 = vadd.f32 %v3216, %v3312
        %3314 = vdwg.mxu0
        %3315 = vst [vmem:[%s292] sm:$0xff] %v3276
        %3316 = vst [vmem:[%s292 + $0x8] sm:$0xff] %v3278
        %3317 = vst [vmem:[%s292 + $0x10] sm:$0xff] %v3281
        %3318 = vst [vmem:[%s292 + $0x18] sm:$0xff] %v3283
        %3319 = vst [vmem:[%s292 + $0x20] sm:$0xff] %v3286
        %3320 = vst [vmem:[%s292 + $0x28] sm:$0xff] %v3288
        %3321 = vst [vmem:[%s292 + $0x30] sm:$0xff] %v3291
        %3322 = vst [vmem:[%s292 + $0x38] sm:$0xff] %v3293
        %3323 = vst [vmem:[%s292 + $0x40] sm:$0xff] %v3296
        %3324 = vst [vmem:[%s292 + $0x48] sm:$0xff] %v3298
        %3325 = vst [vmem:[%s292 + $0x50] sm:$0xff] %v3301
        %3326 = vst [vmem:[%s292 + $0x58] sm:$0xff] %v3303
        %3327 = vst [vmem:[%s292 + $0x60] sm:$0xff] %v3306
        %3328 = vst [vmem:[%s292 + $0x68] sm:$0xff] %v3308
        %3329 = vst [vmem:[%s292 + $0x70] sm:$0xff] %v3311
        %3330 = vst [vmem:[%s292 + $0x78] sm:$0xff] %v3313
        %s3331 = sand.u32 %s142, 1
        %s3332 = scalar_lea.sflag [#allocation4], %s3331
        %s3333 = sand.u32 %s142, 1
        %s3334 = smul.addr %s3333, 128
        %s3335 = scalar_lea.vmem [#allocation10], %s3334
        // Predicated region
        $region57: #{tpu_custom_call.1} parent=39 // pred_check
          %p3336 = pneg %p152
        $region58: #{tpu_custom_call.1} parent=39 // pred_check_branch
          %3338 = sbr.rel (%p3336) target = $region60
        $region59: #{tpu_custom_call.1} parent=39 // pred_region
          %3340 = vsyncadd %s3332, 0
          %s3341 = smul.addr %s24, 16
          %s3342 = smul.addr %s3341, 8
          %s3343 = scalar_lea.hbm %s5, %s3342
          %s3344 = sshll.u32 %s3335, 4
          %s3345 = int_to_ptr.vmem [resolvable:$true] %s3344
          %s3346 = sshll.u32 %s3343, 4
          %s3347 = int_to_ptr.hbm [resolvable:$true] %s3346
          %3352 = dma.vmem_to_hbm [thread:$0]  %s3345, 2048, %s3347, %s3332, 128, 128, 8
        $region60: #{tpu_custom_call.1} parent=39 // pred_fallthru
          _
      $region40: #{tpu_custom_call.1} parent=5 // pred_fallthru
        _
      %p3353 = scmp.le.s32.totalorder 2, %s19
      // Predicated region
      $region61: #{tpu_custom_call.1} parent=5 // pred_check
        %p3354 = pneg %p3353
      $region62: #{tpu_custom_call.1} parent=5 // pred_check_branch
        %3356 = sbr.rel (%p3354) target = $region64
      $region63: #{tpu_custom_call.1} parent=5 // pred_region
        %s3357 = ssub.s32 %s19, 2
        // Predicated region
        $region65: #{tpu_custom_call.1} parent=63 // pred_check
          %p3358 = pneg %p158
        $region66: #{tpu_custom_call.1} parent=63 // pred_check_branch
          %3360 = sbr.rel (%p3358) target = $region68
        $region67: #{tpu_custom_call.1} parent=63 // pred_region
          %s3361 = sand.u32 %s143, 1
          %s3362 = scalar_lea.sflag [#allocation4], %s3361
          %s3363 = sand.u32 %s143, 1
          %s3364 = smul.addr %s3363, 128
          %s3365 = scalar_lea.vmem [#allocation10], %s3364
          %3367 = dma.done %s3362, 2048
        $region68: #{tpu_custom_call.1} parent=63 // pred_fallthru
          _
      $region64: #{tpu_custom_call.1} parent=5 // pred_fallthru
        _
    $region6: #{tpu_custom_call.1} parent=1 // loop_footer
      %s23 = sadd.s32 1, %s19
    $region7: #{tpu_custom_call.1} parent=1 // loop_footer_branch
      %18 = sbr.rel target = $region3
    $region8: #{tpu_custom_call.1} parent=1 // loop_exit
      _
    %3368 = vsyncpa [#allocation3], 1
    %s3369 = scalar_lea.sflag [#allocation3], 1
    %3370 = vsyncpa %s3369, 1
    %3371 = vsyncpa [#allocation6], 1
    %3372 = vsyncpa [#allocation9], 1
    %3373 = vsyncpa [#allocation4], 1
    %s3374 = scalar_lea.sflag [#allocation4], 1
    %3375 = vsyncpa %s3374, 1

</llo_original>
